<compile_context>
chip_gen: v7x
topology: tpu7x:2x2x1
jax: 0.10.0
libtpu: 0.0.40
codegen_flags: <defaults>
</compile_context>

<pallas_src>
import functools
import math

import jax
import jax.numpy as jnp
from jax.experimental import pallas as pl
from jax.experimental.pallas import tpu as pltpu


# Tile caps (chosen to be safe on v7x's 64 MiB VMEM and good on v5e/v6e; on v5e/v6e
# tm/vmem could be raised further for the HBM-bound expand/project GEMMs).
_TM_CAP = 256
_TN_CAP = 256
_TK_CAP = 512
_TC = 128                                  # channel tile for VPU kernels
_VMEM_LIMIT = 64 * 1024 * 1024


# ---------------------------------------------------------------------------- #
# Small helpers
# ---------------------------------------------------------------------------- #
def _round_up(x, m):
    return (x + m - 1) // m * m


def _pad_to_128(c):
    return _round_up(c, 128)


def _pad2d(a, rows, cols):
    return jnp.pad(a, ((0, rows - a.shape[0]), (0, cols - a.shape[1])))


def _pick_tile(dim, cap):
    t = cap
    while t >= 128:
        if dim % t == 0:
            return t
        t //= 2
    return dim          # full-dim block (only the tiny stem K=27 hits this)


def _gate_tile(hw):
    """Largest multiple-of-8 tile <= 256 dividing H*W (so an M tile never spans two
    batch rows and the SE gate can be indexed per tile).  None -> fallback path."""
    for t in (256, 128, 64, 32, 16, 8):
        if hw % t == 0:
            return t
    return None


def _same_pad(size, k, stride):
    out = -(-size // stride)
    pad = max((out - 1) * stride + k - size, 0)
    return out, pad // 2, pad - pad // 2


# ---------------------------------------------------------------------------- #
# Pallas kernels
# ---------------------------------------------------------------------------- #
def _gemm_kernel(*refs, act, has_residual, has_gate):
    """Tiled GEMM (bf16 operands, f32 accumulator) with optional fused SE-gate
    prologue, fused per-column scale/shift, optional residual add and activation."""
    it = iter(refs)
    x_ref = next(it)
    g_ref = next(it) if has_gate else None
    w_ref, s_ref, t_ref = next(it), next(it), next(it)
    r_ref = next(it) if has_residual else None
    o_ref, acc_ref = next(it), next(it)

    k = pl.program_id(2)

    @pl.when(k == 0)
    def _():
        acc_ref[...] = jnp.zeros_like(acc_ref)

    x = x_ref[...]
    if has_gate:
        # SE gate fused into the prologue (was a standalone memory pass before).
        x = (x.astype(jnp.float32) * g_ref[0]).astype(jnp.bfloat16)
    acc_ref[...] += jnp.dot(x, w_ref[...], preferred_element_type=jnp.float32)

    @pl.when(k == pl.num_programs(2) - 1)
    def _():
        y = acc_ref[...] * s_ref[...] + t_ref[...]
        if has_residual:
            y = y + r_ref[...].astype(jnp.float32)
        if act == "relu":
            y = jnp.maximum(y, 0.0)
        elif act == "swish":
            y = y * jax.nn.sigmoid(y)
        elif act == "sigmoid":
            y = jax.nn.sigmoid(y)
        o_ref[...] = y.astype(o_ref.dtype)


def _dwconv_kernel(*refs, kh, kw, stride, Ho, Wo):
    """Depthwise conv + folded BN + swish (VPU), gridded over (batch, 128-channel)
    blocks.  Inputs are the stride*stride parity planes of the zero-padded NHWC
    activation, so every in-kernel slice is stride-1.  The W-axis slice + f32 cast
    is hoisted out of the tap loop (k casts instead of k^2).  Also emits the spatial
    mean (consumed by the SE block)."""
    n_planes = stride * stride
    plane_refs = refs[:n_planes]
    w_ref, s_ref, t_ref, o_ref, pool_ref = refs[n_planes:]
    w = w_ref[...]                                   # (kh*kw, TC) f32
    planes = [r[0] for r in plane_refs]              # (hpar, wpar, TC) bf16 values

    # Hoist: one W-shifted f32 copy per (column-tap, row-parity) pair.
    shifted = {}
    for kj in range(kw):
        dj = kj // stride
        for rp in range(stride):
            p = rp * stride + (kj % stride)
            shifted[(kj, rp)] = planes[p][:, dj:dj + Wo, :].astype(jnp.float32)

    acc = None
    for ki in range(kh):
        rp, di = ki % stride, ki // stride
        for kj in range(kw):
            xs = shifted[(kj, rp)][di:di + Ho, :, :]
            term = xs * w[ki * kw + kj].reshape(1, 1, -1)
            acc = term if acc is None else acc + term

    y = acc * s_ref[...].reshape(1, 1, -1) + t_ref[...].reshape(1, 1, -1)
    y = y * jax.nn.sigmoid(y)                        # swish
    o_ref[0] = y.astype(o_ref.dtype)
    pool_ref[...] = jnp.mean(y, axis=(0, 1)).reshape(1, 1, -1)


def _se_mlp_kernel(p_ref, w1_ref, b1_ref, w2_ref, b2_ref, o_ref):
    """Squeeze-excite gate: sigmoid(W2 @ swish(W1 @ pooled + b1) + b2).  Tiny."""
    h = jnp.dot(p_ref[...], w1_ref[...],
                preferred_element_type=jnp.float32) + b1_ref[...]
    h = h * jax.nn.sigmoid(h)
    g = jnp.dot(h.astype(jnp.bfloat16), w2_ref[...],
                preferred_element_type=jnp.float32) + b2_ref[...]
    o_ref[...] = jax.nn.sigmoid(g)


def _se_scale_kernel(x_ref, g_ref, o_ref):
    g = g_ref[...].reshape(1, 1, 1, -1)
    o_ref[...] = (x_ref[...].astype(jnp.float32) * g).astype(o_ref.dtype)


def _gap_kernel(x_ref, o_ref):
    # (1, H, W, TC) -> (1, 1, TC) spatial mean
    o_ref[...] = jnp.mean(x_ref[...].astype(jnp.float32), axis=(1, 2)).reshape(1, 1, -1)


def _head_kernel(img_ref, meta_ref, w1_ref, s1_ref, t1_ref, w2_ref, s2_ref, t2_ref,
                 wci_ref, wcm_ref, sc_ref, tc_ref, o_ref):
    """Fused metadata MLP (Linear+BN+ReLU x2) + classifier over [img | meta]."""
    m = jnp.dot(meta_ref[...], w1_ref[...], preferred_element_type=jnp.float32)
    m = jnp.maximum(m * s1_ref[...] + t1_ref[...], 0.0)
    # TODO(synk): nn.Dropout(p=0.2) is identity (inference mode).
    m = jnp.dot(m.astype(jnp.bfloat16), w2_ref[...], preferred_element_type=jnp.float32)
    m = jnp.maximum(m * s2_ref[...] + t2_ref[...], 0.0)
    y = (jnp.dot(img_ref[...], wci_ref[...], preferred_element_type=jnp.float32)
         + jnp.dot(m.astype(jnp.bfloat16), wcm_ref[...],
                   preferred_element_type=jnp.float32))
    o_ref[...] = y * sc_ref[...] + tc_ref[...]


# ---------------------------------------------------------------------------- #
# Pallas wrappers
# ---------------------------------------------------------------------------- #
def gemm_bn_act(x, w, scale, shift, *, act="none", residual=None, gate=None,
                rows_per_batch=None, out_dtype=jnp.bfloat16):
    """(M,K) @ (K,N) * scale[N] + shift[N]  (+residual) (+activation), with an
    optional SE gate (per-batch, per-K-channel) fused into the prologue."""
    M, K = x.shape
    K2, N = w.shape
    assert K == K2

    if gate is not None:
        tm = _gate_tile(rows_per_batch)
        assert tm is not None and M % tm == 0
        Mp = M
    else:
        tm = _TM_CAP if M >= _TM_CAP else _round_up(M, 8)
        Mp = _round_up(M, tm)
    tn = _pick_tile(N, _TN_CAP)
    tk = _pick_tile(K, _TK_CAP)

    x = x.astype(jnp.bfloat16)
    if Mp != M:
        x = jnp.pad(x, ((0, Mp - M), (0, 0)))
    grid = (Mp // tm, N // tn, K // tk)

    args = [x]
    in_specs = [pl.BlockSpec((tm, tk), lambda i, j, k: (i, k))]
    if gate is not None:                       # gate: (B, 1, K) f32
        hw = rows_per_batch
        args.append(gate.astype(jnp.float32))
        in_specs.append(
            pl.BlockSpec((1, 1, tk), lambda i, j, k: ((i * tm) // hw, 0, k)))
    args += [w.astype(jnp.bfloat16),
             scale.reshape(1, N).astype(jnp.float32),
             shift.reshape(1, N).astype(jnp.float32)]
    in_specs += [pl.BlockSpec((tk, tn), lambda i, j, k: (k, j)),
                 pl.BlockSpec((1, tn), lambda i, j, k: (0, j)),
                 pl.BlockSpec((1, tn), lambda i, j, k: (0, j))]
    res_bytes = 0
    if residual is not None:
        r = residual.astype(jnp.bfloat16)
        if Mp != M:
            r = jnp.pad(r, ((0, Mp - M), (0, 0)))
        args.append(r)
        in_specs.append(pl.BlockSpec((tm, tn), lambda i, j, k: (i, j)))
        res_bytes = Mp * N * 2

    out = pl.pallas_call(
        functools.partial(_gemm_kernel, act=act,
                          has_residual=residual is not None,
                          has_gate=gate is not None),
        out_shape=jax.ShapeDtypeStruct((Mp, N), out_dtype),
        grid_spec=pltpu.PrefetchScalarGridSpec(
            num_scalar_prefetch=0,
            grid=grid,
            in_specs=in_specs,
            out_specs=pl.BlockSpec((tm, tn), lambda i, j, k: (i, j)),
            scratch_shapes=[pltpu.VMEM((tm, tn), jnp.float32)],
        ),
        compiler_params=pltpu.CompilerParams(
            dimension_semantics=("parallel", "parallel", "arbitrary"),
            vmem_limit_bytes=_VMEM_LIMIT,
        ),
        cost_estimate=pl.CostEstimate(
            flops=2 * Mp * K * N,
            transcendentals=Mp * N if act in ("swish", "sigmoid") else 0,
            bytes_accessed=Mp * K * 2 + K * N * 2 + Mp * N * 2 + 8 * N + res_bytes,
        ),
    )(*args)
    return out[:M] if Mp != M else out


def depthwise_conv_bn_swish(x, p, *, k, stride):
    """Depthwise conv (TF-SAME padding) + folded BN + swish; also returns the
    spatial mean so the SE block does not re-read the feature map from HBM.
    Gridded over (batch, 128-channel) blocks."""
    N, H, W, C = x.shape                     # C is a multiple of 128 (padded)
    Ho, pt, pb = _same_pad(H, k, stride)
    Wo, pw0, pw1 = _same_pad(W, k, stride)
    hpar = Ho + (k - 1) // stride
    wpar = Wo + (k - 1) // stride
    eh = max(stride * hpar - (H + pt + pb), 0)
    ew = max(stride * wpar - (W + pw0 + pw1), 0)
    # TODO(synk): the pad + parity-plane gather below is still XLA-side HBM traffic;
    # move it in-kernel (strided pl.ds reads / halo handling) for large resolutions.
    xp = jnp.pad(x, ((0, 0), (pt, pb + eh), (pw0, pw1 + ew), (0, 0)))
    planes = [xp[:, a::stride, b::stride, :][:, :hpar, :wpar, :]
              for a in range(stride) for b in range(stride)]
    n_planes = stride * stride
    nc = C // _TC

    in_specs = ([pl.BlockSpec((1, hpar, wpar, _TC), lambda n, c: (n, 0, 0, c))] * n_planes
                + [pl.BlockSpec((k * k, _TC), lambda n, c: (0, c)),
                   pl.BlockSpec((1, _TC), lambda n, c: (0, c)),
                   pl.BlockSpec((1, _TC), lambda n, c: (0, c))])
    # TODO(synk): add a spatial-row grid axis (with halo DMA) for very large images.
    out, pooled = pl.pallas_call(
        functools.partial(_dwconv_kernel, kh=k, kw=k, stride=stride, Ho=Ho, Wo=Wo),
        out_shape=(jax.ShapeDtypeStruct((N, Ho, Wo, C), jnp.bfloat16),
                   jax.ShapeDtypeStruct((N, 1, C), jnp.float32)),
        grid_spec=pltpu.PrefetchScalarGridSpec(
            num_scalar_prefetch=0,
            grid=(N, nc),
            in_specs=in_specs,
            out_specs=[pl.BlockSpec((1, Ho, Wo, _TC), lambda n, c: (n, 0, 0, c)),
                       pl.BlockSpec((1, 1, _TC), lambda n, c: (n, 0, c))],
        ),
        compiler_params=pltpu.CompilerParams(
            dimension_semantics=("parallel", "parallel"),
            vmem_limit_bytes=_VMEM_LIMIT),
    )(*planes, p["w"], p["scale"], p["shift"])
    return out, pooled


def se_gate(pooled, p_red, p_exp):
    """pooled: (N, 1, C) -> gate (N, 1, C) in (0, 1)."""
    N = pooled.shape[0]
    C = pooled.shape[-1]
    Np = _round_up(N, 8)
    x = jnp.pad(pooled.reshape(N, C).astype(jnp.bfloat16), ((0, Np - N), (0, 0)))
    out = pl.pallas_call(
        _se_mlp_kernel,
        out_shape=jax.ShapeDtypeStruct((Np, C), jnp.float32),
    )(x, p_red["w"], p_red["b"], p_exp["w"], p_exp["b"])
    return out[:N].reshape(N, 1, C)


def se_scale(x, gate):
    """Fallback standalone SE application (only used for tiny feature maps where the
    gate cannot be fused into the project GEMM prologue)."""
    N, H, W, C = x.shape
    return pl.pallas_call(
        _se_scale_kernel,
        out_shape=jax.ShapeDtypeStruct((N, H, W, C), jnp.bfloat16),
        grid_spec=pltpu.PrefetchScalarGridSpec(
            num_scalar_prefetch=0,
            grid=(N, C // _TC),
            in_specs=[pl.BlockSpec((1, H, W, _TC), lambda n, c: (n, 0, 0, c)),
                      pl.BlockSpec((1, 1, _TC), lambda n, c: (n, 0, c))],
            out_specs=pl.BlockSpec((1, H, W, _TC), lambda n, c: (n, 0, 0, c)),
        ),
        compiler_params=pltpu.CompilerParams(
            dimension_semantics=("parallel", "parallel"),
            vmem_limit_bytes=_VMEM_LIMIT),
    )(x, gate.astype(jnp.float32))


def global_avg_pool(x):
    N, H, W, C = x.shape
    out = pl.pallas_call(
        _gap_kernel,
        out_shape=jax.ShapeDtypeStruct((N, 1, C), jnp.float32),
        grid_spec=pltpu.PrefetchScalarGridSpec(
            num_scalar_prefetch=0,
            grid=(N, C // _TC),
            in_specs=[pl.BlockSpec((1, H, W, _TC), lambda n, c: (n, 0, 0, c))],
            out_specs=pl.BlockSpec((1, 1, _TC), lambda n, c: (n, 0, c)),
        ),
        compiler_params=pltpu.CompilerParams(
            dimension_semantics=("parallel", "parallel"),
            vmem_limit_bytes=_VMEM_LIMIT),
    )(x)
    return out.reshape(N, C)


def head_forward(img, meta, params):
    """Fused metadata MLP + classifier (single Pallas launch, classifier weight
    pre-split so the concat disappears)."""
    N = img.shape[0]
    Np = _round_up(N, 8)
    img_b = jnp.pad(img.astype(jnp.bfloat16), ((0, Np - N), (0, 0)))
    meta_b = jnp.pad(meta.astype(jnp.bfloat16), ((0, Np - N), (0, 0)))
    c1, c2, cls = params["csv1"], params["csv2"], params["cls"]
    out_dim = cls["w_img"].shape[1]
    out = pl.pallas_call(
        _head_kernel,
        out_shape=jax.ShapeDtypeStruct((Np, out_dim), jnp.float32),
    )(img_b, meta_b,
      c1["w"], c1["scale"].reshape(1, -1), c1["shift"].reshape(1, -1),
      c2["w"], c2["scale"].reshape(1, -1), c2["shift"].reshape(1, -1),
      cls["w_img"], cls["w_meta"],
      cls["scale"].reshape(1, -1), cls["shift"].reshape(1, -1))
    return out[:N]


# ---------------------------------------------------------------------------- #
# Conv building blocks (glue = reshapes; compute = Pallas kernels)
# ---------------------------------------------------------------------------- #
def conv1x1_bn(x, p, *, act="none", residual=None, gate=None):
    N, H, W, C = x.shape
    hw = H * W
    if gate is not None and _gate_tile(hw) is None:
        x = se_scale(x, gate)          # fallback: only for minuscule feature maps
        gate = None
    xm = x.reshape(N * hw, C)
    rm = residual.reshape(N * hw, -1) if residual is not None else None
    out = gemm_bn_act(xm, p["w"], p["scale"], p["shift"], act=act, residual=rm,
                      gate=gate, rows_per_batch=hw)
    return out.reshape(N, H, W, -1)


def stem_conv_bn_swish(x, p, *, k=3, stride=2):
    # The stem is the only im2col-materialized conv (K = 3*3*3 = 27, negligible);
    # all other spatial convs are depthwise and avoid im2col entirely.
    N, H, W, C = x.shape
    Ho, pt, pb = _same_pad(H, k, stride)
    Wo, pw0, pw1 = _same_pad(W, k, stride)
    xp = jnp.pad(x, ((0, 0), (pt, pb), (pw0, pw1), (0, 0)))
    cols = [xp[:, i:i + stride * (Ho - 1) + 1:stride,
               j:j + stride * (Wo - 1) + 1:stride, :]
            for i in range(k) for j in range(k)]
    patches = jnp.concatenate(cols, axis=-1).reshape(N * Ho * Wo, k * k * C)
    out = gemm_bn_act(patches, p["w"], p["scale"], p["shift"], act="swish")
    return out.reshape(N, Ho, Wo, -1)


def mbconv_forward(x, p):
    xin = x
    if "expand" in p:
        x = conv1x1_bn(x, p["expand"], act="swish")
    x, pooled = depthwise_conv_bn_swish(x, p["dw"], k=p["k"], stride=p["s"])
    gate = se_gate(pooled, p["se_red"], p["se_exp"])      # (N, 1, Cexp) in (0, 1)
    # Project 1x1 conv + folded BN; SE gate is applied in the GEMM prologue and the
    # residual add is fused into the epilogue (no standalone elementwise passes).
    # TODO(synk): MBConv drop_connect is identity (inference mode).
    res = xin if p["skip"] else None
    return conv1x1_bn(x, p["project"], act="none", residual=res, gate=gate)


# ---------------------------------------------------------------------------- #
# Deterministic parameter construction (synthetic init, BN pre-folded, channel-
# padded to 128 multiples, bf16 weights)
# ---------------------------------------------------------------------------- #
def _bn_stats(key, c):
    kg, km = jax.random.split(key)
    return dict(
        gamma=1.0 + 0.01 * jax.random.normal(kg, (c,), jnp.float32),
        beta=jnp.zeros((c,), jnp.float32),
        mean=0.01 * jax.random.normal(km, (c,), jnp.float32),
        var=jnp.ones((c,), jnp.float32),
    )


def _fold_bn(bn, eps):
    inv = 1.0 / jnp.sqrt(bn["var"] + eps)
    scale = bn["gamma"] * inv
    shift = bn["beta"] - bn["mean"] * scale
    return scale, shift


def _conv_bn_params(key, cin, cout, k, *, cin_pad=None, cout_pad=None, eps=1e-3):
    """k x k conv + folded BN -> (k*k*cin_pad, cout_pad) GEMM weight (bf16).
    Padded rows/cols are zero, so padded lanes stay exactly zero downstream."""
    if cin_pad is None:
        cin_pad = cin
    if cout_pad is None:
        cout_pad = cout
    assert k == 1 or cin_pad == cin           # im2col row padding only valid for 1x1
    kw_, kb = jax.random.split(key)
    fan_in = cin * k * k
    w = jax.random.normal(kw_, (cout, cin, k, k), jnp.float32) * jnp.sqrt(2.0 / fan_in)
    wmat = jnp.transpose(w, (2, 3, 1, 0)).reshape(k * k * cin, cout)
    wmat = _pad2d(wmat, k * k * cin_pad, cout_pad)
    scale, shift = _fold_bn(_bn_stats(kb, cout), eps)
    scale = jnp.pad(scale, (0, cout_pad - cout))
    shift = jnp.pad(shift, (0, cout_pad - cout))
    return dict(w=wmat.astype(jnp.bfloat16), scale=scale, shift=shift)


def _dw_bn_params(key, c, k, c_pad, eps=1e-3):
    kw_, kb = jax.random.split(key)
    w = jax.random.normal(kw_, (c, k * k), jnp.float32) * jnp.sqrt(2.0 / (k * k))
    wk = jnp.pad(w.T, ((0, 0), (0, c_pad - c)))            # (k*k, c_pad)
    scale, shift = _fold_bn(_bn_stats(kb, c), eps)
    scale = jnp.pad(scale, (0, c_pad - c)).reshape(1, c_pad)
    shift = jnp.pad(shift, (0, c_pad - c)).reshape(1, c_pad)
    return dict(w=wk.astype(jnp.float32), scale=scale, shift=shift)


def _se_conv_params(key, cin, cout, cin_pad, cout_pad):
    kw_, kb = jax.random.split(key)
    w = jax.random.normal(kw_, (cout, cin), jnp.float32) * jnp.sqrt(2.0 / cin)
    b = 0.02 * jax.random.normal(kb, (cout,), jnp.float32)
    wt = _pad2d(w.T, cin_pad, cout_pad)
    bp = jnp.pad(b, (0, cout_pad - cout)).reshape(1, cout_pad)
    return dict(w=wt.astype(jnp.bfloat16), b=bp)


def _linear_bn_params(key, cin, cout, eps=1e-5):
    kw_, kb, kbn = jax.random.split(key, 3)
    w = jax.random.normal(kw_, (cout, cin), jnp.float32) * jnp.sqrt(2.0 / cin)
    b = 0.02 * jax.random.normal(kb, (cout,), jnp.float32)
    bn = _bn_stats(kbn, cout)
    inv = 1.0 / jnp.sqrt(bn["var"] + eps)
    scale = bn["gamma"] * inv
    shift = (b - bn["mean"]) * scale + bn["beta"]
    return dict(w=w.T.astype(jnp.bfloat16), scale=scale, shift=shift)


def _mbconv_params(key, cin, cout, k, s, e):
    cexp = cin * e
    csq = max(1, int(cin * 0.25))
    cin_p, cexp_p, cout_p = _pad_to_128(cin), _pad_to_128(cexp), _pad_to_128(cout)
    keys = jax.random.split(key, 5)
    p = dict(k=k, s=s, skip=(s == 1 and cin == cout))
    if e != 1:
        p["expand"] = _conv_bn_params(keys[0], cin, cexp, 1,
                                      cin_pad=cin_p, cout_pad=cexp_p)
    p["dw"] = _dw_bn_params(keys[1], cexp, k, cexp_p)
    p["se_red"] = _se_conv_params(keys[2], cexp, csq, cexp_p, csq)
    p["se_exp"] = _se_conv_params(keys[3], csq, cexp, csq, cexp_p)
    p["project"] = _conv_bn_params(keys[4], cexp, cout, 1,
                                   cin_pad=cexp_p, cout_pad=cout_p)
    return p


# EfficientNet-B0 block template; B2 scaling = width 1.1, depth 1.2, divisor 8.
_B0_BLOCKS = [
    # repeats, kernel, stride, expand, in_filters, out_filters
    (1, 3, 1, 1, 32, 16),
    (2, 3, 2, 6, 16, 24),
    (2, 5, 2, 6, 24, 40),
    (3, 3, 2, 6, 40, 80),
    (3, 5, 1, 6, 80, 112),
    (4, 5, 2, 6, 112, 192),
    (1, 3, 1, 6, 192, 320),
]
_WIDTH, _DEPTH, _DIV = 1.1, 1.2, 8


def _round_filters(f):
    f *= _WIDTH
    new_f = max(_DIV, int(f + _DIV / 2) // _DIV * _DIV)
    if new_f < 0.9 * f:
        new_f += _DIV
    return int(new_f)


def _round_repeats(r):
    return int(math.ceil(_DEPTH * r))


def init_effnet_b2_params(key):
    keys = jax.random.split(key, len(_B0_BLOCKS) + 2)
    stem_out = _round_filters(32)
    params = {"stem": _conv_bn_params(keys[0], 3, stem_out, 3,
                                      cout_pad=_pad_to_128(stem_out))}
    blocks = []
    cin = stem_out
    for idx, (r, kk, s, e, _fin, fout) in enumerate(_B0_BLOCKS):
        cout = _round_filters(fout)
        reps = _round_repeats(r)
        bkeys = jax.random.split(keys[idx + 1], reps)
        for i in range(reps):
            stride = s if i == 0 else 1
            blocks.append(_mbconv_params(bkeys[i], cin, cout, kk, stride, e))
            cin = cout
    params["blocks"] = blocks
    head_out = _round_filters(1280)                      # 1408 (already 128-aligned)
    params["head"] = _conv_bn_params(keys[-1], cin, head_out, 1,
                                     cin_pad=_pad_to_128(cin), cout_pad=head_out)
    return params


def init_network_params(key, output_size, no_columns):
    k = jax.random.split(key, 4)
    params = {"effnet": init_effnet_b2_params(k[0])}
    params["csv1"] = _linear_bn_params(k[1], no_columns, 250)
    params["csv2"] = _linear_bn_params(k[2], 250, 250)
    kcw, kcb = jax.random.split(k[3])
    feat_img = _round_filters(1280)                      # 1408
    feat = feat_img + 250
    w = (jax.random.normal(kcw, (output_size, feat), jnp.float32) * 0.02).T
    params["cls"] = dict(
        w_img=w[:feat_img].astype(jnp.bfloat16),         # (1408, out)
        w_meta=w[feat_img:].astype(jnp.bfloat16),        # (250, out)
        scale=jnp.ones((output_size,), jnp.float32),
        shift=0.02 * jax.random.normal(kcb, (output_size,), jnp.float32),
    )
    return params


# ---------------------------------------------------------------------------- #
# Forward passes
# ---------------------------------------------------------------------------- #
def effnet_extract_features(image_nchw, params):
    x = jnp.transpose(image_nchw, (0, 2, 3, 1)).astype(jnp.bfloat16)  # NCHW->NHWC
    x = stem_conv_bn_swish(x, params["stem"], k=3, stride=2)
    for bp in params["blocks"]:
        x = mbconv_forward(x, bp)
    return conv1x1_bn(x, params["head"], act="swish")           # (N, H', W', 1408)


def effnetnetwork_forward(image, meta, params):
    feats = effnet_extract_features(image, params["effnet"])
    img = global_avg_pool(feats)                                 # (N, 1408) f32
    # TODO(synk): nn.Dropout(p=0.2) layers are identity (inference mode).
    return head_forward(img, meta, params)                       # (N, output_size)


# ---------------------------------------------------------------------------- #
if __name__ == "__main__":
    key = jax.random.PRNGKey(0)
    kp, ki, km = jax.random.split(key, 3)

    output_size, no_columns = 8, 4
    params = init_network_params(kp, output_size, no_columns)

    image = jax.random.normal(ki, (2, 3, 64, 64), jnp.float32)  # NCHW, like PyTorch
    meta = jax.random.normal(km, (2, no_columns), jnp.float32)

    out = effnetnetwork_forward(image, meta, params)
    out = jax.block_until_ready(out)

    assert out.shape == (2, output_size), out.shape
    assert bool(jnp.all(jnp.isfinite(out)))
    print("KERNEL_OK")
</pallas_src>

<mosaic_0001>
module attributes {stable_mosaic.version = 11 : i64} {
  func.func @_gemm_kernel(%arg0: i32, %arg1: i32, %arg2: i32, %arg3: memref<256x27xbf16, #tpu.memory_space<vmem>>, %arg4: memref<27x128xbf16, #tpu.memory_space<vmem>>, %arg5: memref<1x128xf32, #tpu.memory_space<vmem>>, %arg6: memref<1x128xf32, #tpu.memory_space<vmem>>, %arg7: memref<256x128xbf16, #tpu.memory_space<vmem>>, %arg8: memref<256x128xf32, #tpu.memory_space<vmem>>) attributes {dimension_semantics = [#tpu.dimension_semantics<parallel>, #tpu.dimension_semantics<parallel>, #tpu.dimension_semantics<arbitrary>], iteration_bounds = array<i64: 8, 1, 1>, scalar_prefetch = 0 : i64, scratch_operands = 1 : i64, tpu.core_type = #tpu.core_type<tc>, window_params = [{transform_indices = @transform_0, window_bounds = array<i64: 256, 27>}, {transform_indices = @transform_1, window_bounds = array<i64: 27, 128>}, {transform_indices = @transform_2, window_bounds = array<i64: 1, 128>}, {transform_indices = @transform_3, window_bounds = array<i64: 1, 128>}, {transform_indices = @transform_4, window_bounds = array<i64: 256, 128>}]} {
    %c0_i32 = arith.constant 0 : i32
    %0 = arith.cmpi eq, %arg2, %c0_i32 : i32
    %1 = arith.extui %0 : i1 to i32
    %c0_i32_0 = arith.constant 0 : i32
    %2 = arith.cmpi ne, %1, %c0_i32_0 : i32
    scf.if %2 {
      %cst_10 = arith.constant 0.000000e+00 : f32
      %12 = vector.broadcast %cst_10 : f32 to vector<256x128xf32>
      %c0_11 = arith.constant 0 : index
      %c0_12 = arith.constant 0 : index
      %13 = vector.load %arg8[%c0_11, %c0_12] : memref<256x128xf32, #tpu.memory_space<vmem>>, vector<256x128xf32>
      tpu.vector_store %arg8[%c0_11, %c0_12], %12 {strides = array<i32>} : memref<256x128xf32, #tpu.memory_space<vmem>>, vector<256x128xf32>,
    } else {
    }
    %c0 = arith.constant 0 : index
    %c0_1 = arith.constant 0 : index
    %3 = vector.load %arg3[%c0, %c0_1] : memref<256x27xbf16, #tpu.memory_space<vmem>>, vector<256x27xbf16>
    %c0_2 = arith.constant 0 : index
    %c0_3 = arith.constant 0 : index
    %4 = vector.load %arg8[%c0_2, %c0_3] : memref<256x128xf32, #tpu.memory_space<vmem>>, vector<256x128xf32>
    %c0_4 = arith.constant 0 : index
    %c0_5 = arith.constant 0 : index
    %5 = vector.load %arg4[%c0_4, %c0_5] : memref<27x128xbf16, #tpu.memory_space<vmem>>, vector<27x128xbf16>
    %cst = arith.constant dense<0.000000e+00> : vector<256x128xf32>
    %6 = tpu.matmul %3, %5, %cst {dimension_numbers = #tpu.dot_dimension_numbers<[1], [0], [0], [1], [0, 0, 1, 1], [], []>} : vector<256x27xbf16>, vector<27x128xbf16>, vector<256x128xf32> -> vector<256x128xf32>
    %7 = arith.addf %4, %6 : vector<256x128xf32>
    %c0_6 = arith.constant 0 : index
    %c0_7 = arith.constant 0 : index
    %8 = vector.load %arg8[%c0_6, %c0_7] : memref<256x128xf32, #tpu.memory_space<vmem>>, vector<256x128xf32>
    tpu.vector_store %arg8[%c0_6, %c0_7], %7 {strides = array<i32>} : memref<256x128xf32, #tpu.memory_space<vmem>>, vector<256x128xf32>,
    %c0_i32_8 = arith.constant 0 : i32
    %9 = arith.cmpi eq, %arg2, %c0_i32_8 : i32
    %10 = arith.extui %9 : i1 to i32
    %c0_i32_9 = arith.constant 0 : i32
    %11 = arith.cmpi ne, %10, %c0_i32_9 : i32
    scf.if %11 {
      %c0_10 = arith.constant 0 : index
      %c0_11 = arith.constant 0 : index
      %12 = vector.load %arg8[%c0_10, %c0_11] : memref<256x128xf32, #tpu.memory_space<vmem>>, vector<256x128xf32>
      %c0_12 = arith.constant 0 : index
      %c0_13 = arith.constant 0 : index
      %13 = vector.load %arg5[%c0_12, %c0_13] : memref<1x128xf32, #tpu.memory_space<vmem>>, vector<1x128xf32>
      %14 = vector.broadcast %13 : vector<1x128xf32> to vector<256x128xf32>
      %15 = arith.mulf %12, %14 : vector<256x128xf32>
      %c0_14 = arith.constant 0 : index
      %c0_15 = arith.constant 0 : index
      %16 = vector.load %arg6[%c0_14, %c0_15] : memref<1x128xf32, #tpu.memory_space<vmem>>, vector<1x128xf32>
      %17 = vector.broadcast %16 : vector<1x128xf32> to vector<256x128xf32>
      %18 = arith.addf %15, %17 : vector<256x128xf32>
      %19 = arith.negf %18 : vector<256x128xf32>
      %20 = math.exp %19 : vector<256x128xf32>
      %cst_16 = arith.constant 1.000000e+00 : f32
      %21 = vector.broadcast %cst_16 : f32 to vector<256x128xf32>
      %22 = arith.addf %21, %20 : vector<256x128xf32>
      %23 = arith.divf %21, %22 : vector<256x128xf32>
      %24 = arith.mulf %18, %23 : vector<256x128xf32>
      %25 = arith.truncf %24 : vector<256x128xf32> to vector<256x128xbf16>
      %c0_17 = arith.constant 0 : index
      %c0_18 = arith.constant 0 : index
      %26 = vector.load %arg7[%c0_17, %c0_18] : memref<256x128xbf16, #tpu.memory_space<vmem>>, vector<256x128xbf16>
      tpu.vector_store %arg7[%c0_17, %c0_18], %25 {strides = array<i32>} : memref<256x128xbf16, #tpu.memory_space<vmem>>, vector<256x128xbf16>,
    } else {
    }
    return
  }
  func.func @transform_0(%arg0: i32, %arg1: i32, %arg2: i32) -> (i32, i32) {
    %c0_i32 = arith.constant 0 : i32
    return %arg0, %arg2 : i32, i32
  }
  func.func @transform_1(%arg0: i32, %arg1: i32, %arg2: i32) -> (i32, i32) {
    %c0_i32 = arith.constant 0 : i32
    return %arg2, %arg1 : i32, i32
  }
  func.func @transform_2(%arg0: i32, %arg1: i32, %arg2: i32) -> (i32, i32) {
    %c0_i32 = arith.constant 0 : i32
    %c0_i32_0 = arith.constant 0 : i32
    return %c0_i32, %arg1 : i32, i32
  }
  func.func @transform_3(%arg0: i32, %arg1: i32, %arg2: i32) -> (i32, i32) {
    %c0_i32 = arith.constant 0 : i32
    %c0_i32_0 = arith.constant 0 : i32
    return %c0_i32, %arg1 : i32, i32
  }
  func.func @transform_4(%arg0: i32, %arg1: i32, %arg2: i32) -> (i32, i32) {
    %c0_i32 = arith.constant 0 : i32
    return %arg0, %arg1 : i32, i32
  }
}

</mosaic_0001>

<llo_original>
// kernel: tpu_custom_call.1
$region0: #{tpu_custom_call.1}
  #allocation0 [shape = 'u32[]', space=smem, size = 0x4, offset = 0x4, fixed_abs, tag = 'smem constant byte address 0x4 - core index']
  #allocation1 [shape = 'u32[144,128]{1,0:T(1,128)}', space=vmem, size = 0x12000, scoped, tag = 'internal scratch']
  #allocation2 [shape = 'f32[256,128]{1,0:T(8,128)}', space=vmem, size = 0x20000, scoped, tag = 'scratch operand']
  %s0 = inlined_call_operand.hbm [shape: bf16[2048,27], index: 0, kind: input, shape index: {}]
  %s1 = inlined_call_operand.hbm [shape: bf16[27,128], index: 1, kind: input, shape index: {}]
  %s2 = inlined_call_operand.hbm [shape: f32[1,128], index: 2, kind: input, shape index: {}]
  %s3 = inlined_call_operand.hbm [shape: f32[1,128], index: 3, kind: input, shape index: {}]
  %s4 = inlined_call_operand.hbm [shape: bf16[2048,128], index: 4, kind: output, shape index: {}]
  %s5 = sld [smem:[#allocation0]]
  $region73: #{tpu_custom_call.1} parent=0
    _
  %s7 = ssub.s32 1, %s5
  %s8 = scalar_select 0, %s7, %s5
  $region1: #{tpu_custom_call.1} parent=0
    #allocation3 [shape = 'u8[131072]{0}', space=vmem, size = 0x20000, scoped, tag = 'input window, operand 0']
    #allocation4 [shape = 's32[2]{0}', space=sflag, size = 0x8, scoped, tag = 'scoped memory for tpu_custom_call.1']
    #allocation5 [shape = 's32[2]{0}', space=sflag, size = 0x8, scoped, tag = 'scoped memory for tpu_custom_call.1']
    #allocation6 [shape = 'u8[8192]{0}', space=vmem, size = 0x2000, scoped, tag = 'input window, operand 1, single buffered']
    #allocation7 [shape = 's32[1]{0}', space=sflag, size = 0x4, scoped, tag = 'scoped memory for tpu_custom_call.1']
    #allocation8 [shape = 'u8[512]{0}', space=vmem, size = 0x400, scoped, tag = 'input window, operand 2, single buffered']
    #allocation9 [shape = 'u8[512]{0}', space=vmem, size = 0x400, scoped, tag = 'input window, operand 3, single buffered']
    #allocation10 [shape = 's32[1]{0}', space=sflag, size = 0x4, scoped, tag = 'scoped memory for tpu_custom_call.1']
    #allocation11 [shape = 'u8[131072]{0}', space=vmem, size = 0x20000, scoped, tag = 'output window, operand 0']
    %9 = vsyncpa [#allocation4], 0
    %s10 = scalar_lea.sflag [#allocation4], 1
    %11 = vsyncpa %s10, 0
    %12 = vsyncpa [#allocation7], 0
    %13 = vsyncpa [#allocation10], 0
    %14 = vsyncpa [#allocation5], 0
    %s15 = scalar_lea.sflag [#allocation5], 1
    %16 = vsyncpa %s15, 0
    loop: start=0, step=1, limit=10
    $region2: #{tpu_custom_call.1} parent=1 // loop_pre_header
      _
    $region3: #{tpu_custom_call.1} parent=1 // loop_header
      %s18 = sphi 0, %s22
      %p19 = scmp.ge.s32.totalorder %s18, 10
      %s25 = sphi 0, %s44
      %s26 = sphi 0, %s40
      %s27 = sphi 0, %s36
      %s28 = sphi 0, %s25
      %s29 = sphi 0, %s26
      %s30 = sphi 0, %s27
      %s31 = sphi 0, %s28
      %s32 = sphi 0, %s29
      %s33 = sphi 0, %s30
      %s49 = sphi 0, %s51
      %s52 = sphi 0, %s49
      %s53 = sphi 0, %s52
      %s69 = sphi 0, %s53
      %s77 = sphi 0, %s79
      %s80 = sphi 0, %s77
      %s81 = sphi 0, %s80
      %s97 = sphi 0, %s81
      %s103 = sphi 0, %s105
      %s106 = sphi 0, %s103
      %s107 = sphi 0, %s106
      %s123 = sphi 0, %s107
      %s129 = sphi 0, %s131
      %s132 = sphi 0, %s129
      %s133 = sphi 0, %s132
      %s149 = sphi 0, %s133
      %s157 = sphi 0, %s159
      %s160 = sphi 0, %s157
      %s161 = sphi 0, %s160
      %s177 = sphi 0, %s161
    $region4: #{tpu_custom_call.1} parent=1 // loop_header_branch
      %21 = sbr.rel (%p19) target = $region8
    $region5: #{tpu_custom_call.1} parent=1 // loop_body
      %s23 = ssub.s32 %s18, 1
      %s24 = ssub.s32 %s18, 2
      %s34 = sadd.s32 1, %s27
      %p35 = scmp.ge.s32.totalorder %s34, 1
      %s36 = scalar_select %p35, 0, %s34
      %s37 = sadd.s32 1, %s26
      %s38 = scalar_select %p35, %s37, %s26
      %p39 = scmp.ge.s32.totalorder %s38, 1
      %s40 = scalar_select %p39, 0, %s38
      %s41 = sadd.s32 1, %s25
      %s42 = scalar_select %p39, %s41, %s25
      %p43 = scmp.ge.s32.totalorder %s42, 8
      %s44 = scalar_select %p43, 0, %s42
      %s45 = ssub.s32 %s25, %s44
      %s46 = ssub.s32 %s27, %s36
      %s47 = sor.u32 %s45, %s46
      %p48 = scmp.eq.s32.totalorder %s47, 0
      %s50 = sadd.s32 %s49, 1
      %s51 = scalar_select %p48, %s49, %s50
      %p54 = pneg %p48
      %p55 = scmp.eq.s32.totalorder %s18, 7
      %p56 = por %p54, %p55
      %p57 = scmp.ne.s32.totalorder %s49, %s52
      %p58 = scmp.eq.s32.totalorder %s18, 0
      %p59 = por %p57, %p58
      %p60 = scmp.ne.s32.totalorder %s49, %s52
      %p61 = scmp.eq.s32.totalorder %s23, 7
      %p62 = por %p60, %p61
      %p63 = scmp.ne.s32.totalorder %s52, %s53
      %p64 = scmp.eq.s32.totalorder %s23, 0
      %p65 = por %p63, %p64
      %p66 = scmp.ne.s32.totalorder %s52, %s53
      %p67 = scmp.eq.s32.totalorder %s24, 7
      %p68 = por %p66, %p67
      %p70 = scmp.ne.s32.totalorder %s53, %s69
      %p71 = scmp.eq.s32.totalorder %s24, 0
      %p72 = por %p70, %p71
      %s73 = ssub.s32 %s27, %s36
      %s74 = ssub.s32 %s26, %s40
      %s75 = sor.u32 %s73, %s74
      %p76 = scmp.eq.s32.totalorder %s75, 0
      %s78 = sadd.s32 %s77, 1
      %s79 = scalar_select %p76, %s77, %s78
      %p82 = pneg %p76
      %p83 = scmp.eq.s32.totalorder %s18, 7
      %p84 = por %p82, %p83
      %p85 = scmp.ne.s32.totalorder %s77, %s80
      %p86 = scmp.eq.s32.totalorder %s18, 0
      %p87 = por %p85, %p86
      %p88 = scmp.ne.s32.totalorder %s77, %s80
      %p89 = scmp.eq.s32.totalorder %s23, 7
      %p90 = por %p88, %p89
      %p91 = scmp.ne.s32.totalorder %s80, %s81
      %p92 = scmp.eq.s32.totalorder %s23, 0
      %p93 = por %p91, %p92
      %p94 = scmp.ne.s32.totalorder %s80, %s81
      %p95 = scmp.eq.s32.totalorder %s24, 7
      %p96 = por %p94, %p95
      %p98 = scmp.ne.s32.totalorder %s81, %s97
      %p99 = scmp.eq.s32.totalorder %s24, 0
      %p100 = por %p98, %p99
      %s101 = ssub.s32 %s26, %s40
      %p102 = scmp.eq.s32.totalorder %s101, 0
      %s104 = sadd.s32 %s103, 1
      %s105 = scalar_select %p102, %s103, %s104
      %p108 = pneg %p102
      %p109 = scmp.eq.s32.totalorder %s18, 7
      %p110 = por %p108, %p109
      %p111 = scmp.ne.s32.totalorder %s103, %s106
      %p112 = scmp.eq.s32.totalorder %s18, 0
      %p113 = por %p111, %p112
      %p114 = scmp.ne.s32.totalorder %s103, %s106
      %p115 = scmp.eq.s32.totalorder %s23, 7
      %p116 = por %p114, %p115
      %p117 = scmp.ne.s32.totalorder %s106, %s107
      %p118 = scmp.eq.s32.totalorder %s23, 0
      %p119 = por %p117, %p118
      %p120 = scmp.ne.s32.totalorder %s106, %s107
      %p121 = scmp.eq.s32.totalorder %s24, 7
      %p122 = por %p120, %p121
      %p124 = scmp.ne.s32.totalorder %s107, %s123
      %p125 = scmp.eq.s32.totalorder %s24, 0
      %p126 = por %p124, %p125
      %s127 = ssub.s32 %s26, %s40
      %p128 = scmp.eq.s32.totalorder %s127, 0
      %s130 = sadd.s32 %s129, 1
      %s131 = scalar_select %p128, %s129, %s130
      %p134 = pneg %p128
      %p135 = scmp.eq.s32.totalorder %s18, 7
      %p136 = por %p134, %p135
      %p137 = scmp.ne.s32.totalorder %s129, %s132
      %p138 = scmp.eq.s32.totalorder %s18, 0
      %p139 = por %p137, %p138
      %p140 = scmp.ne.s32.totalorder %s129, %s132
      %p141 = scmp.eq.s32.totalorder %s23, 7
      %p142 = por %p140, %p141
      %p143 = scmp.ne.s32.totalorder %s132, %s133
      %p144 = scmp.eq.s32.totalorder %s23, 0
      %p145 = por %p143, %p144
      %p146 = scmp.ne.s32.totalorder %s132, %s133
      %p147 = scmp.eq.s32.totalorder %s24, 7
      %p148 = por %p146, %p147
      %p150 = scmp.ne.s32.totalorder %s133, %s149
      %p151 = scmp.eq.s32.totalorder %s24, 0
      %p152 = por %p150, %p151
      %s153 = ssub.s32 %s25, %s44
      %s154 = ssub.s32 %s26, %s40
      %s155 = sor.u32 %s153, %s154
      %p156 = scmp.eq.s32.totalorder %s155, 0
      %s158 = sadd.s32 %s157, 1
      %s159 = scalar_select %p156, %s157, %s158
      %p162 = pneg %p156
      %p163 = scmp.eq.s32.totalorder %s18, 7
      %p164 = por %p162, %p163
      %p165 = scmp.ne.s32.totalorder %s157, %s160
      %p166 = scmp.eq.s32.totalorder %s18, 0
      %p167 = por %p165, %p166
      %p168 = scmp.ne.s32.totalorder %s157, %s160
      %p169 = scmp.eq.s32.totalorder %s23, 7
      %p170 = por %p168, %p169
      %p171 = scmp.ne.s32.totalorder %s160, %s161
      %p172 = scmp.eq.s32.totalorder %s23, 0
      %p173 = por %p171, %p172
      %p174 = scmp.ne.s32.totalorder %s160, %s161
      %p175 = scmp.eq.s32.totalorder %s24, 7
      %p176 = por %p174, %p175
      %p178 = scmp.ne.s32.totalorder %s161, %s177
      %p179 = scmp.eq.s32.totalorder %s24, 0
      %p180 = por %p178, %p179
      %p181 = scmp.le.s32.totalorder 1, %s18
      %p182 = scmp.lt.s32.totalorder %s18, 9
      %p183 = pnand %p181, %p182
      %p184 = pneg %p183
      // Predicated region
      $region9: #{tpu_custom_call.1} parent=5 // pred_check
        _
      $region10: #{tpu_custom_call.1} parent=5 // pred_check_branch
        %186 = sbr.rel (%p183) target = $region12
      $region11: #{tpu_custom_call.1} parent=5 // pred_region
        %s187 = ssub.s32 %s18, 1
        // Predicated region
        $region13: #{tpu_custom_call.1} parent=11 // pred_check
          %p188 = pneg %p93
        $region14: #{tpu_custom_call.1} parent=11 // pred_check_branch
          %190 = sbr.rel (%p188) target = $region16
        $region15: #{tpu_custom_call.1} parent=11 // pred_region
          %s191 = smul.u32 4, %s30
          %s193 = ssub.s32 256, 256
          %194 = vsyncadd [#allocation7], %s193
          %s195 = sadd.s32 %s29, %s191
          %s196 = smul.addr %s195, 64
          %s197 = scalar_lea.hbm %s1, %s196
          %s198 = sshll.u32 [#allocation6], 4
          %s199 = int_to_ptr.vmem [resolvable:$true] %s198
          %204 = dma.hbm_to_vmem [thread:$0]  %s197, 256, %s199, [#allocation7], 64, 64, 4
        $region16: #{tpu_custom_call.1} parent=11 // pred_fallthru
          _
        // Predicated region
        $region17: #{tpu_custom_call.1} parent=11 // pred_check
          %p205 = pneg %p119
        $region18: #{tpu_custom_call.1} parent=11 // pred_check_branch
          %207 = sbr.rel (%p205) target = $region20
        $region19: #{tpu_custom_call.1} parent=11 // pred_region
          %s209 = ssub.s32 16, 16
          %210 = vsyncadd [#allocation7], %s209
          %s211 = smul.addr %s29, 16
          %s212 = scalar_lea.hbm %s2, %s211
          %s214 = sshll.u32 [#allocation8], 4
          %s215 = int_to_ptr.vmem [resolvable:$true] %s214
          %217 = dma.hbm_to_vmem [thread:$0]  %s212, 16, %s215, [#allocation7]
        $region20: #{tpu_custom_call.1} parent=11 // pred_fallthru
          _
        // Predicated region
        $region21: #{tpu_custom_call.1} parent=11 // pred_check
          %p218 = pneg %p145
        $region22: #{tpu_custom_call.1} parent=11 // pred_check_branch
          %220 = sbr.rel (%p218) target = $region24
        $region23: #{tpu_custom_call.1} parent=11 // pred_region
          %s222 = ssub.s32 16, 16
          %223 = vsyncadd [#allocation10], %s222
          %s224 = smul.addr %s29, 16
          %s225 = scalar_lea.hbm %s3, %s224
          %s227 = sshll.u32 [#allocation9], 4
          %s228 = int_to_ptr.vmem [resolvable:$true] %s227
          %230 = dma.hbm_to_vmem [thread:$0]  %s225, 16, %s228, [#allocation10]
        $region24: #{tpu_custom_call.1} parent=11 // pred_fallthru
          _
      $region12: #{tpu_custom_call.1} parent=5 // pred_fallthru
        _
      %p231 = scmp.lt.s32.totalorder %s18, 8
      // Predicated region
      $region25: #{tpu_custom_call.1} parent=5 // pred_check
        %p232 = pneg %p231
      $region26: #{tpu_custom_call.1} parent=5 // pred_check_branch
        %234 = sbr.rel (%p232) target = $region28
      $region27: #{tpu_custom_call.1} parent=5 // pred_region
        // Predicated region
        $region29: #{tpu_custom_call.1} parent=27 // pred_check
          %p235 = pneg %p59
        $region30: #{tpu_custom_call.1} parent=27 // pred_check_branch
          %237 = sbr.rel (%p235) target = $region32
        $region31: #{tpu_custom_call.1} parent=27 // pred_region
          %s238 = sand.u32 %s49, 1
          %s239 = scalar_lea.sflag [#allocation4], %s238
          %s240 = sand.u32 %s49, 1
          %s241 = smul.addr %s240, 128
          %s242 = scalar_lea.vmem [#allocation3], %s241
          %s243 = smul.u32 32, %s25
          %s245 = ssub.s32 2048, 2048
          %246 = vsyncadd %s239, %s245
          %s247 = sadd.s32 %s27, %s243
          %s248 = smul.addr %s247, 64
          %s249 = scalar_lea.hbm %s0, %s248
          %s250 = sshll.u32 %s242, 4
          %s251 = int_to_ptr.vmem [resolvable:$true] %s250
          %256 = dma.hbm_to_vmem [thread:$0]  %s249, 2048, %s251, %s239, 64, 64, 4
        $region32: #{tpu_custom_call.1} parent=27 // pred_fallthru
          _
      $region28: #{tpu_custom_call.1} parent=5 // pred_fallthru
        _
      %p257 = scmp.le.s32.totalorder 1, %s18
      %p258 = scmp.lt.s32.totalorder %s18, 9
      %p259 = pnand %p257, %p258
      %p260 = pneg %p259
      // Predicated region
      $region33: #{tpu_custom_call.1} parent=5 // pred_check
        _
      $region34: #{tpu_custom_call.1} parent=5 // pred_check_branch
        %262 = sbr.rel (%p259) target = $region36
      $region35: #{tpu_custom_call.1} parent=5 // pred_region
        %s263 = ssub.s32 %s18, 1
        %s264 = sand.u32 %s52, 1
        %s265 = scalar_lea.sflag [#allocation4], %s264
        %s266 = sand.u32 %s52, 1
        %s267 = smul.addr %s266, 128
        %s268 = scalar_lea.vmem [#allocation3], %s267
        // Predicated region
        $region37: #{tpu_custom_call.1} parent=35 // pred_check
          %p269 = pneg %p65
        $region38: #{tpu_custom_call.1} parent=35 // pred_check_branch
          %271 = sbr.rel (%p269) target = $region40
        $region39: #{tpu_custom_call.1} parent=35 // pred_region
          %272 = dma.done %s265, 2048
        $region40: #{tpu_custom_call.1} parent=35 // pred_fallthru
          _
        // Predicated region
        $region41: #{tpu_custom_call.1} parent=35 // pred_check
          %p273 = pneg %p93
        $region42: #{tpu_custom_call.1} parent=35 // pred_check_branch
          %275 = sbr.rel (%p273) target = $region44
        $region43: #{tpu_custom_call.1} parent=35 // pred_region
          %276 = dma.done [#allocation7], 256
        $region44: #{tpu_custom_call.1} parent=35 // pred_fallthru
          _
        // Predicated region
        $region45: #{tpu_custom_call.1} parent=35 // pred_check
          %p277 = pneg %p119
        $region46: #{tpu_custom_call.1} parent=35 // pred_check_branch
          %279 = sbr.rel (%p277) target = $region48
        $region47: #{tpu_custom_call.1} parent=35 // pred_region
          %280 = dma.done [#allocation7], 16
        $region48: #{tpu_custom_call.1} parent=35 // pred_fallthru
          _
        // Predicated region
        $region49: #{tpu_custom_call.1} parent=35 // pred_check
          %p281 = pneg %p145
        $region50: #{tpu_custom_call.1} parent=35 // pred_check_branch
          %283 = sbr.rel (%p281) target = $region52
        $region51: #{tpu_custom_call.1} parent=35 // pred_region
          %284 = dma.done [#allocation10], 16
        $region52: #{tpu_custom_call.1} parent=35 // pred_fallthru
          _
        %s285 = sand.u32 %s52, 1
        %s286 = scalar_lea.sflag [#allocation4], %s285
        %s287 = sand.u32 %s52, 1
        %s288 = smul.addr %s287, 128
        %s289 = scalar_lea.vmem [#allocation3], %s288
        %p290 = pneg %p65
        %p291 = pneg %p62
        %p292 = pneg %p93
        %p293 = pneg %p90
        %p294 = pneg %p119
        %p295 = pneg %p116
        %p296 = pneg %p145
        %p297 = pneg %p142
        %p298 = pneg %p173
        %p299 = pneg %p170
        %s300 = sand.u32 %s160, 1
        %s301 = scalar_lea.sflag [#allocation5], %s300
        %s302 = sand.u32 %s160, 1
        %s303 = smul.addr %s302, 128
        %s304 = scalar_lea.vmem [#allocation11], %s303
        %s305 = smul.u32 32, %s28
        %s306 = smul.u32 4, %s30
        %s307 = smul.u32 32, %s28
        %p309 = scmp.eq.s32.totalorder %s30, 0
        // Predicated region
        $region53: #{tpu_custom_call.1} parent=35 // pred_check
          %p310 = pneg %p309
        $region54: #{tpu_custom_call.1} parent=35 // pred_check_branch
          %312 = sbr.rel (%p310) target = $region56
        $region55: #{tpu_custom_call.1} parent=35 // pred_region
          %313 = vst [vmem:[#allocation2] sm:$0xff] 0.0
          %314 = vst [vmem:[#allocation2 + $0x8] sm:$0xff] 0.0
          %315 = vst [vmem:[#allocation2 + $0x10] sm:$0xff] 0.0
          %316 = vst [vmem:[#allocation2 + $0x18] sm:$0xff] 0.0
          %317 = vst [vmem:[#allocation2 + $0x20] sm:$0xff] 0.0
          %318 = vst [vmem:[#allocation2 + $0x28] sm:$0xff] 0.0
          %319 = vst [vmem:[#allocation2 + $0x30] sm:$0xff] 0.0
          %320 = vst [vmem:[#allocation2 + $0x38] sm:$0xff] 0.0
          %321 = vst [vmem:[#allocation2 + $0x40] sm:$0xff] 0.0
          %322 = vst [vmem:[#allocation2 + $0x48] sm:$0xff] 0.0
          %323 = vst [vmem:[#allocation2 + $0x50] sm:$0xff] 0.0
          %324 = vst [vmem:[#allocation2 + $0x58] sm:$0xff] 0.0
          %325 = vst [vmem:[#allocation2 + $0x60] sm:$0xff] 0.0
          %326 = vst [vmem:[#allocation2 + $0x68] sm:$0xff] 0.0
          %327 = vst [vmem:[#allocation2 + $0x70] sm:$0xff] 0.0
          %328 = vst [vmem:[#allocation2 + $0x78] sm:$0xff] 0.0
          %329 = vst [vmem:[#allocation2 + $0x80] sm:$0xff] 0.0
          %330 = vst [vmem:[#allocation2 + $0x88] sm:$0xff] 0.0
          %331 = vst [vmem:[#allocation2 + $0x90] sm:$0xff] 0.0
          %332 = vst [vmem:[#allocation2 + $0x98] sm:$0xff] 0.0
          %333 = vst [vmem:[#allocation2 + $0xa0] sm:$0xff] 0.0
          %334 = vst [vmem:[#allocation2 + $0xa8] sm:$0xff] 0.0
          %335 = vst [vmem:[#allocation2 + $0xb0] sm:$0xff] 0.0
          %336 = vst [vmem:[#allocation2 + $0xb8] sm:$0xff] 0.0
          %337 = vst [vmem:[#allocation2 + $0xc0] sm:$0xff] 0.0
          %338 = vst [vmem:[#allocation2 + $0xc8] sm:$0xff] 0.0
          %339 = vst [vmem:[#allocation2 + $0xd0] sm:$0xff] 0.0
          %340 = vst [vmem:[#allocation2 + $0xd8] sm:$0xff] 0.0
          %341 = vst [vmem:[#allocation2 + $0xe0] sm:$0xff] 0.0
          %342 = vst [vmem:[#allocation2 + $0xe8] sm:$0xff] 0.0
          %343 = vst [vmem:[#allocation2 + $0xf0] sm:$0xff] 0.0
          %344 = vst [vmem:[#allocation2 + $0xf8] sm:$0xff] 0.0
        $region56: #{tpu_custom_call.1} parent=35 // pred_fallthru
          _
        %v345 = vld [vmem:[%s268] sm:$0xf]
        %v346 = vld [vmem:[%s268 + $0x4] sm:$0xf]
        %v347 = vld [vmem:[%s268 + $0x8] sm:$0xf]
        %v348 = vld [vmem:[%s268 + $0xc] sm:$0xf]
        %v349 = vld [vmem:[%s268 + $0x10] sm:$0xf]
        %v350 = vld [vmem:[%s268 + $0x14] sm:$0xf]
        %v351 = vld [vmem:[%s268 + $0x18] sm:$0xf]
        %v352 = vld [vmem:[%s268 + $0x1c] sm:$0xf]
        %v353 = vld [vmem:[%s268 + $0x20] sm:$0xf]
        %v354 = vld [vmem:[%s268 + $0x24] sm:$0xf]
        %v355 = vld [vmem:[%s268 + $0x28] sm:$0xf]
        %v356 = vld [vmem:[%s268 + $0x2c] sm:$0xf]
        %v357 = vld [vmem:[%s268 + $0x30] sm:$0xf]
        %v358 = vld [vmem:[%s268 + $0x34] sm:$0xf]
        %v359 = vld [vmem:[%s268 + $0x38] sm:$0xf]
        %v360 = vld [vmem:[%s268 + $0x3c] sm:$0xf]
        %v361 = vld [vmem:[%s268 + $0x40] sm:$0xf]
        %v362 = vld [vmem:[%s268 + $0x44] sm:$0xf]
        %v363 = vld [vmem:[%s268 + $0x48] sm:$0xf]
        %v364 = vld [vmem:[%s268 + $0x4c] sm:$0xf]
        %v365 = vld [vmem:[%s268 + $0x50] sm:$0xf]
        %v366 = vld [vmem:[%s268 + $0x54] sm:$0xf]
        %v367 = vld [vmem:[%s268 + $0x58] sm:$0xf]
        %v368 = vld [vmem:[%s268 + $0x5c] sm:$0xf]
        %v369 = vld [vmem:[%s268 + $0x60] sm:$0xf]
        %v370 = vld [vmem:[%s268 + $0x64] sm:$0xf]
        %v371 = vld [vmem:[%s268 + $0x68] sm:$0xf]
        %v372 = vld [vmem:[%s268 + $0x6c] sm:$0xf]
        %v373 = vld [vmem:[%s268 + $0x70] sm:$0xf]
        %v374 = vld [vmem:[%s268 + $0x74] sm:$0xf]
        %v375 = vld [vmem:[%s268 + $0x78] sm:$0xf]
        %v376 = vld [vmem:[%s268 + $0x7c] sm:$0xf]
        %v377 = vld [vmem:[#allocation2] sm:$0xff]
        %v378 = vld [vmem:[#allocation2 + $0x8] sm:$0xff]
        %v379 = vld [vmem:[#allocation2 + $0x10] sm:$0xff]
        %v380 = vld [vmem:[#allocation2 + $0x18] sm:$0xff]
        %v381 = vld [vmem:[#allocation2 + $0x20] sm:$0xff]
        %v382 = vld [vmem:[#allocation2 + $0x28] sm:$0xff]
        %v383 = vld [vmem:[#allocation2 + $0x30] sm:$0xff]
        %v384 = vld [vmem:[#allocation2 + $0x38] sm:$0xff]
        %v385 = vld [vmem:[#allocation2 + $0x40] sm:$0xff]
        %v386 = vld [vmem:[#allocation2 + $0x48] sm:$0xff]
        %v387 = vld [vmem:[#allocation2 + $0x50] sm:$0xff]
        %v388 = vld [vmem:[#allocation2 + $0x58] sm:$0xff]
        %v389 = vld [vmem:[#allocation2 + $0x60] sm:$0xff]
        %v390 = vld [vmem:[#allocation2 + $0x68] sm:$0xff]
        %v391 = vld [vmem:[#allocation2 + $0x70] sm:$0xff]
        %v392 = vld [vmem:[#allocation2 + $0x78] sm:$0xff]
        %v393 = vld [vmem:[#allocation2 + $0x80] sm:$0xff]
        %v394 = vld [vmem:[#allocation2 + $0x88] sm:$0xff]
        %v395 = vld [vmem:[#allocation2 + $0x90] sm:$0xff]
        %v396 = vld [vmem:[#allocation2 + $0x98] sm:$0xff]
        %v397 = vld [vmem:[#allocation2 + $0xa0] sm:$0xff]
        %v398 = vld [vmem:[#allocation2 + $0xa8] sm:$0xff]
        %v399 = vld [vmem:[#allocation2 + $0xb0] sm:$0xff]
        %v400 = vld [vmem:[#allocation2 + $0xb8] sm:$0xff]
        %v401 = vld [vmem:[#allocation2 + $0xc0] sm:$0xff]
        %v402 = vld [vmem:[#allocation2 + $0xc8] sm:$0xff]
        %v403 = vld [vmem:[#allocation2 + $0xd0] sm:$0xff]
        %v404 = vld [vmem:[#allocation2 + $0xd8] sm:$0xff]
        %v405 = vld [vmem:[#allocation2 + $0xe0] sm:$0xff]
        %v406 = vld [vmem:[#allocation2 + $0xe8] sm:$0xff]
        %v407 = vld [vmem:[#allocation2 + $0xf0] sm:$0xff]
        %v408 = vld [vmem:[#allocation2 + $0xf8] sm:$0xff]
        %v409 = vld [vmem:[#allocation6] sm:$0xf]
        %v410 = vld [vmem:[#allocation6 + $0x4] sm:$0xf]
        %v411 = vld [vmem:[#allocation6 + $0x8] sm:$0xf]
        %v412 = vld [vmem:[#allocation6 + $0xc] sm:$0x3]
        %v445 = vunpack.c.l.b16 %v345
        %v446 = vunpack.c.l.b16 %v346
        %v447 = vunpack.c.l.b16 %v347
        %v448 = vunpack.c.l.b16 %v348
        %v449 = vunpack.c.l.b16 %v349
        %v450 = vunpack.c.l.b16 %v350
        %v451 = vunpack.c.l.b16 %v351
        %v452 = vunpack.c.l.b16 %v352
        %v453 = vunpack.c.l.b16 %v353
        %v454 = vunpack.c.l.b16 %v354
        %v455 = vunpack.c.l.b16 %v355
        %v456 = vunpack.c.l.b16 %v356
        %v457 = vunpack.c.l.b16 %v357
        %v458 = vunpack.c.l.b16 %v358
        %v459 = vunpack.c.l.b16 %v359
        %v460 = vunpack.c.l.b16 %v360
        %v461 = vunpack.c.l.b16 %v361
        %v462 = vunpack.c.l.b16 %v362
        %v463 = vunpack.c.l.b16 %v363
        %v464 = vunpack.c.l.b16 %v364
        %v465 = vunpack.c.l.b16 %v365
        %v466 = vunpack.c.l.b16 %v366
        %v467 = vunpack.c.l.b16 %v367
        %v468 = vunpack.c.l.b16 %v368
        %v469 = vunpack.c.l.b16 %v369
        %v470 = vunpack.c.l.b16 %v370
        %v471 = vunpack.c.l.b16 %v371
        %v472 = vunpack.c.l.b16 %v372
        %v473 = vunpack.c.l.b16 %v373
        %v474 = vunpack.c.l.b16 %v374
        %v475 = vunpack.c.l.b16 %v375
        %v476 = vunpack.c.l.b16 %v376
        %v477 = vpack.c.b16 %v446, %v445
        %v478 = vpack.c.b16 %v448, %v447
        %v479 = vpack.c.b16 %v450, %v449
        %v480 = vpack.c.b16 %v452, %v451
        %v481 = vpack.c.b16 %v454, %v453
        %v482 = vpack.c.b16 %v456, %v455
        %v483 = vpack.c.b16 %v458, %v457
        %v484 = vpack.c.b16 %v460, %v459
        %v485 = vpack.c.b16 %v462, %v461
        %v486 = vpack.c.b16 %v464, %v463
        %v487 = vpack.c.b16 %v466, %v465
        %v488 = vpack.c.b16 %v468, %v467
        %v489 = vpack.c.b16 %v470, %v469
        %v490 = vpack.c.b16 %v472, %v471
        %v491 = vpack.c.b16 %v474, %v473
        %v492 = vpack.c.b16 %v476, %v475
        %v497 = vunpack.c.l.b16 %v409
        %v498 = vunpack.c.l.b16 %v410
        %v499 = vunpack.c.l.b16 %v411
        %v500 = vunpack.c.l.b16 %v412
        %v501 = vpack.c.b16 %v498, %v497
        %v502 = vpack.c.b16 %v500, %v499
        %vm504 = vcmask 220160
        %v506 = vsel %vm504, %v477, 0
        %v509 = vsel %vm504, %v478, 0
        %v512 = vsel %vm504, %v479, 0
        %v515 = vsel %vm504, %v480, 0
        %v518 = vsel %vm504, %v481, 0
        %v521 = vsel %vm504, %v482, 0
        %v524 = vsel %vm504, %v483, 0
        %v527 = vsel %vm504, %v484, 0
        %v530 = vsel %vm504, %v485, 0
        %v533 = vsel %vm504, %v486, 0
        %v536 = vsel %vm504, %v487, 0
        %v539 = vsel %vm504, %v488, 0
        %v542 = vsel %vm504, %v489, 0
        %v545 = vsel %vm504, %v490, 0
        %v548 = vsel %vm504, %v491, 0
        %v551 = vsel %vm504, %v492, 0
        %vm553 = vcmask 1044480
        %vm554 = vcmask 1045504
        %v555 = vsel %vm553, 4294967295, 65535
        %v556 = vsel %vm554, %v555, 0
        %v558 = vand.u32 %v502, %v556
        %560 = vmatprep.subr.bf16.mxu0 0
        %561 = vmatpush1.bf16.msra.mxu0 %v501
        %562 = vmatprep.subr.bf16.mxu0 0
        %563 = vmatpush1.bf16.msra.mxu0 %v558
        %564 = vmatprep.subr.bf16.mxu0 0
        %565 = vmatpush1.bf16.msra.mxu0 0
        %566 = vmatprep.subr.bf16.mxu0 0
        %567 = vmatpush1.bf16.msra.mxu0 0
        %568 = vmatprep.subr.bf16.mxu0 0
        %569 = vmatpush1.bf16.msra.mxu0 0
        %570 = vmatprep.subr.bf16.mxu0 0
        %571 = vmatpush1.bf16.msra.mxu0 0
        %572 = vmatprep.subr.bf16.mxu0 0
        %573 = vmatpush1.bf16.msra.mxu0 0
        %574 = vmatprep.subr.bf16.mxu0 0
        %575 = vmatpush1.bf16.msra.mxu0 0
        %576 = vmatprep.subr.bf16.mxu0 0
        %577 = vmatpush1.bf16.msra.mxu0 0
        %578 = vmatprep.subr.bf16.mxu0 0
        %579 = vmatpush1.bf16.msra.mxu0 0
        %580 = vmatprep.subr.bf16.mxu0 0
        %581 = vmatpush1.bf16.msra.mxu0 0
        %582 = vmatprep.subr.bf16.mxu0 0
        %583 = vmatpush1.bf16.msra.mxu0 0
        %584 = vmatprep.subr.bf16.mxu0 0
        %585 = vmatpush1.bf16.msra.mxu0 0
        %586 = vmatprep.subr.bf16.mxu0 0
        %587 = vmatpush1.bf16.msra.mxu0 0
        %588 = vmatprep.subr.bf16.mxu0 0
        %589 = vmatpush1.bf16.msra.mxu0 0
        %590 = vmatprep.subr.bf16.mxu0 0
        %591 = vmatpush1.bf16.msra.mxu0 0
        %592 = vmatprep.mubr.bf16.mxu0 0
        %593 = vmatmul.mubr.bf16.gmra.mrb[0].mxu0 %v506
        %v594 = vpop.f32.mrb[0].mxu0
        %v595 = vadd.f32 0.0, %v594
        %v596 = vpop.f32.mrb[0].mxu0
        %v597 = vpop.f32.mrb[0].mxu0
        %v598 = vadd.f32 0.0, %v597
        %v599 = vpop.f32.mrb[0].mxu0
        %600 = vmatprep.mubr.bf16.mxu0 0
        %601 = vmatmul.mubr.bf16.gmra.mrb[0].mxu0 %v509
        %v602 = vpop.f32.mrb[0].mxu0
        %v603 = vadd.f32 0.0, %v602
        %v604 = vpop.f32.mrb[0].mxu0
        %v605 = vpop.f32.mrb[0].mxu0
        %v606 = vadd.f32 0.0, %v605
        %v607 = vpop.f32.mrb[0].mxu0
        %608 = vmatprep.mubr.bf16.mxu0 0
        %609 = vmatmul.mubr.bf16.gmra.mrb[0].mxu0 %v512
        %v610 = vpop.f32.mrb[0].mxu0
        %v611 = vadd.f32 0.0, %v610
        %v612 = vpop.f32.mrb[0].mxu0
        %v613 = vpop.f32.mrb[0].mxu0
        %v614 = vadd.f32 0.0, %v613
        %v615 = vpop.f32.mrb[0].mxu0
        %616 = vmatprep.mubr.bf16.mxu0 0
        %617 = vmatmul.mubr.bf16.gmra.mrb[0].mxu0 %v515
        %v618 = vpop.f32.mrb[0].mxu0
        %v619 = vadd.f32 0.0, %v618
        %v620 = vpop.f32.mrb[0].mxu0
        %v621 = vpop.f32.mrb[0].mxu0
        %v622 = vadd.f32 0.0, %v621
        %v623 = vpop.f32.mrb[0].mxu0
        %624 = vmatprep.mubr.bf16.mxu0 0
        %625 = vmatmul.mubr.bf16.gmra.mrb[0].mxu0 %v518
        %v626 = vpop.f32.mrb[0].mxu0
        %v627 = vadd.f32 0.0, %v626
        %v628 = vpop.f32.mrb[0].mxu0
        %v629 = vpop.f32.mrb[0].mxu0
        %v630 = vadd.f32 0.0, %v629
        %v631 = vpop.f32.mrb[0].mxu0
        %632 = vmatprep.mubr.bf16.mxu0 0
        %633 = vmatmul.mubr.bf16.gmra.mrb[0].mxu0 %v521
        %v634 = vpop.f32.mrb[0].mxu0
        %v635 = vadd.f32 0.0, %v634
        %v636 = vpop.f32.mrb[0].mxu0
        %v637 = vpop.f32.mrb[0].mxu0
        %v638 = vadd.f32 0.0, %v637
        %v639 = vpop.f32.mrb[0].mxu0
        %640 = vmatprep.mubr.bf16.mxu0 0
        %641 = vmatmul.mubr.bf16.gmra.mrb[0].mxu0 %v524
        %v642 = vpop.f32.mrb[0].mxu0
        %v643 = vadd.f32 0.0, %v642
        %v644 = vpop.f32.mrb[0].mxu0
        %v645 = vpop.f32.mrb[0].mxu0
        %v646 = vadd.f32 0.0, %v645
        %v647 = vpop.f32.mrb[0].mxu0
        %648 = vmatprep.mubr.bf16.mxu0 0
        %649 = vmatmul.mubr.bf16.gmra.mrb[0].mxu0 %v527
        %v650 = vpop.f32.mrb[0].mxu0
        %v651 = vadd.f32 0.0, %v650
        %v652 = vpop.f32.mrb[0].mxu0
        %v653 = vpop.f32.mrb[0].mxu0
        %v654 = vadd.f32 0.0, %v653
        %v655 = vpop.f32.mrb[0].mxu0
        %656 = vmatprep.mubr.bf16.mxu0 0
        %657 = vmatmul.mubr.bf16.gmra.mrb[0].mxu0 %v530
        %v658 = vpop.f32.mrb[0].mxu0
        %v659 = vadd.f32 0.0, %v658
        %v660 = vpop.f32.mrb[0].mxu0
        %v661 = vpop.f32.mrb[0].mxu0
        %v662 = vadd.f32 0.0, %v661
        %v663 = vpop.f32.mrb[0].mxu0
        %664 = vmatprep.mubr.bf16.mxu0 0
        %665 = vmatmul.mubr.bf16.gmra.mrb[0].mxu0 %v533
        %v666 = vpop.f32.mrb[0].mxu0
        %v667 = vadd.f32 0.0, %v666
        %v668 = vpop.f32.mrb[0].mxu0
        %v669 = vpop.f32.mrb[0].mxu0
        %v670 = vadd.f32 0.0, %v669
        %v671 = vpop.f32.mrb[0].mxu0
        %672 = vmatprep.mubr.bf16.mxu0 0
        %673 = vmatmul.mubr.bf16.gmra.mrb[0].mxu0 %v536
        %v674 = vpop.f32.mrb[0].mxu0
        %v675 = vadd.f32 0.0, %v674
        %v676 = vpop.f32.mrb[0].mxu0
        %v677 = vpop.f32.mrb[0].mxu0
        %v678 = vadd.f32 0.0, %v677
        %v679 = vpop.f32.mrb[0].mxu0
        %680 = vmatprep.mubr.bf16.mxu0 0
        %681 = vmatmul.mubr.bf16.gmra.mrb[0].mxu0 %v539
        %v682 = vpop.f32.mrb[0].mxu0
        %v683 = vadd.f32 0.0, %v682
        %v684 = vpop.f32.mrb[0].mxu0
        %v685 = vpop.f32.mrb[0].mxu0
        %v686 = vadd.f32 0.0, %v685
        %v687 = vpop.f32.mrb[0].mxu0
        %688 = vmatprep.mubr.bf16.mxu0 0
        %689 = vmatmul.mubr.bf16.gmra.mrb[0].mxu0 %v542
        %v690 = vpop.f32.mrb[0].mxu0
        %v691 = vadd.f32 0.0, %v690
        %v692 = vpop.f32.mrb[0].mxu0
        %v693 = vpop.f32.mrb[0].mxu0
        %v694 = vadd.f32 0.0, %v693
        %v695 = vpop.f32.mrb[0].mxu0
        %696 = vmatprep.mubr.bf16.mxu0 0
        %697 = vmatmul.mubr.bf16.gmra.mrb[0].mxu0 %v545
        %v698 = vpop.f32.mrb[0].mxu0
        %v699 = vadd.f32 0.0, %v698
        %v700 = vpop.f32.mrb[0].mxu0
        %v701 = vpop.f32.mrb[0].mxu0
        %v702 = vadd.f32 0.0, %v701
        %v703 = vpop.f32.mrb[0].mxu0
        %704 = vmatprep.mubr.bf16.mxu0 0
        %705 = vmatmul.mubr.bf16.gmra.mrb[0].mxu0 %v548
        %v706 = vpop.f32.mrb[0].mxu0
        %v707 = vadd.f32 0.0, %v706
        %v708 = vpop.f32.mrb[0].mxu0
        %v709 = vpop.f32.mrb[0].mxu0
        %v710 = vadd.f32 0.0, %v709
        %v711 = vpop.f32.mrb[0].mxu0
        %712 = vmatprep.mubr.bf16.mxu0 0
        %713 = vmatmul.mubr.bf16.gmra.mrb[0].mxu0 %v551
        %v714 = vpop.f32.mrb[0].mxu0
        %v715 = vadd.f32 0.0, %v714
        %v716 = vpop.f32.mrb[0].mxu0
        %v717 = vpop.f32.mrb[0].mxu0
        %v718 = vadd.f32 0.0, %v717
        %v719 = vpop.f32.mrb[0].mxu0
        %720 = vdwg.mxu0
        %v721 = vadd.f32 %v377, %v595
        %v722 = vadd.f32 %v378, %v598
        %v723 = vadd.f32 %v379, %v603
        %v724 = vadd.f32 %v380, %v606
        %v725 = vadd.f32 %v381, %v611
        %v726 = vadd.f32 %v382, %v614
        %v727 = vadd.f32 %v383, %v619
        %v728 = vadd.f32 %v384, %v622
        %v729 = vadd.f32 %v385, %v627
        %v730 = vadd.f32 %v386, %v630
        %v731 = vadd.f32 %v387, %v635
        %v732 = vadd.f32 %v388, %v638
        %v733 = vadd.f32 %v389, %v643
        %v734 = vadd.f32 %v390, %v646
        %v735 = vadd.f32 %v391, %v651
        %v736 = vadd.f32 %v392, %v654
        %v737 = vadd.f32 %v393, %v659
        %v738 = vadd.f32 %v394, %v662
        %v739 = vadd.f32 %v395, %v667
        %v740 = vadd.f32 %v396, %v670
        %v741 = vadd.f32 %v397, %v675
        %v742 = vadd.f32 %v398, %v678
        %v743 = vadd.f32 %v399, %v683
        %v744 = vadd.f32 %v400, %v686
        %v745 = vadd.f32 %v401, %v691
        %v746 = vadd.f32 %v402, %v694
        %v747 = vadd.f32 %v403, %v699
        %v748 = vadd.f32 %v404, %v702
        %v749 = vadd.f32 %v405, %v707
        %v750 = vadd.f32 %v406, %v710
        %v751 = vadd.f32 %v407, %v715
        %v752 = vadd.f32 %v408, %v718
        %753 = vst [vmem:[#allocation2] sm:$0xff] %v721
        %754 = vst [vmem:[#allocation2 + $0x8] sm:$0xff] %v722
        %755 = vst [vmem:[#allocation2 + $0x10] sm:$0xff] %v723
        %756 = vst [vmem:[#allocation2 + $0x18] sm:$0xff] %v724
        %757 = vst [vmem:[#allocation2 + $0x20] sm:$0xff] %v725
        %758 = vst [vmem:[#allocation2 + $0x28] sm:$0xff] %v726
        %759 = vst [vmem:[#allocation2 + $0x30] sm:$0xff] %v727
        %760 = vst [vmem:[#allocation2 + $0x38] sm:$0xff] %v728
        %761 = vst [vmem:[#allocation2 + $0x40] sm:$0xff] %v729
        %762 = vst [vmem:[#allocation2 + $0x48] sm:$0xff] %v730
        %763 = vst [vmem:[#allocation2 + $0x50] sm:$0xff] %v731
        %764 = vst [vmem:[#allocation2 + $0x58] sm:$0xff] %v732
        %765 = vst [vmem:[#allocation2 + $0x60] sm:$0xff] %v733
        %766 = vst [vmem:[#allocation2 + $0x68] sm:$0xff] %v734
        %767 = vst [vmem:[#allocation2 + $0x70] sm:$0xff] %v735
        %768 = vst [vmem:[#allocation2 + $0x78] sm:$0xff] %v736
        %769 = vst [vmem:[#allocation2 + $0x80] sm:$0xff] %v737
        %770 = vst [vmem:[#allocation2 + $0x88] sm:$0xff] %v738
        %771 = vst [vmem:[#allocation2 + $0x90] sm:$0xff] %v739
        %772 = vst [vmem:[#allocation2 + $0x98] sm:$0xff] %v740
        %773 = vst [vmem:[#allocation2 + $0xa0] sm:$0xff] %v741
        %774 = vst [vmem:[#allocation2 + $0xa8] sm:$0xff] %v742
        %775 = vst [vmem:[#allocation2 + $0xb0] sm:$0xff] %v743
        %776 = vst [vmem:[#allocation2 + $0xb8] sm:$0xff] %v744
        %777 = vst [vmem:[#allocation2 + $0xc0] sm:$0xff] %v745
        %778 = vst [vmem:[#allocation2 + $0xc8] sm:$0xff] %v746
        %779 = vst [vmem:[#allocation2 + $0xd0] sm:$0xff] %v747
        %780 = vst [vmem:[#allocation2 + $0xd8] sm:$0xff] %v748
        %781 = vst [vmem:[#allocation2 + $0xe0] sm:$0xff] %v749
        %782 = vst [vmem:[#allocation2 + $0xe8] sm:$0xff] %v750
        %783 = vst [vmem:[#allocation2 + $0xf0] sm:$0xff] %v751
        %784 = vst [vmem:[#allocation2 + $0xf8] sm:$0xff] %v752
        // Predicated region
        $region57: #{tpu_custom_call.1} parent=35 // pred_check
          %p785 = pneg %p309
        $region58: #{tpu_custom_call.1} parent=35 // pred_check_branch
          %787 = sbr.rel (%p785) target = $region60
        $region59: #{tpu_custom_call.1} parent=35 // pred_region
          %v788 = vld [vmem:[#allocation2] sm:$0xff]
          %v789 = vld [vmem:[#allocation2 + $0x8] sm:$0xff]
          %v790 = vld [vmem:[#allocation2 + $0x10] sm:$0xff]
          %v791 = vld [vmem:[#allocation2 + $0x18] sm:$0xff]
          %v792 = vld [vmem:[#allocation2 + $0x20] sm:$0xff]
          %v793 = vld [vmem:[#allocation2 + $0x28] sm:$0xff]
          %v794 = vld [vmem:[#allocation2 + $0x30] sm:$0xff]
          %v795 = vld [vmem:[#allocation2 + $0x38] sm:$0xff]
          %v796 = vld [vmem:[#allocation2 + $0x40] sm:$0xff]
          %v797 = vld [vmem:[#allocation2 + $0x48] sm:$0xff]
          %v798 = vld [vmem:[#allocation2 + $0x50] sm:$0xff]
          %v799 = vld [vmem:[#allocation2 + $0x58] sm:$0xff]
          %v800 = vld [vmem:[#allocation2 + $0x60] sm:$0xff]
          %v801 = vld [vmem:[#allocation2 + $0x68] sm:$0xff]
          %v802 = vld [vmem:[#allocation2 + $0x70] sm:$0xff]
          %v803 = vld [vmem:[#allocation2 + $0x78] sm:$0xff]
          %v804 = vld [vmem:[#allocation2 + $0x80] sm:$0xff]
          %v805 = vld [vmem:[#allocation2 + $0x88] sm:$0xff]
          %v806 = vld [vmem:[#allocation2 + $0x90] sm:$0xff]
          %v807 = vld [vmem:[#allocation2 + $0x98] sm:$0xff]
          %v808 = vld [vmem:[#allocation2 + $0xa0] sm:$0xff]
          %v809 = vld [vmem:[#allocation2 + $0xa8] sm:$0xff]
          %v810 = vld [vmem:[#allocation2 + $0xb0] sm:$0xff]
          %v811 = vld [vmem:[#allocation2 + $0xb8] sm:$0xff]
          %v812 = vld [vmem:[#allocation2 + $0xc0] sm:$0xff]
          %v813 = vld [vmem:[#allocation2 + $0xc8] sm:$0xff]
          %v814 = vld [vmem:[#allocation2 + $0xd0] sm:$0xff]
          %v815 = vld [vmem:[#allocation2 + $0xd8] sm:$0xff]
          %v816 = vld [vmem:[#allocation2 + $0xe0] sm:$0xff]
          %v817 = vld [vmem:[#allocation2 + $0xe8] sm:$0xff]
          %v818 = vld [vmem:[#allocation2 + $0xf0] sm:$0xff]
          %v819 = vld [vmem:[#allocation2 + $0xf8] sm:$0xff]
          %v820 = vld [vmem:[#allocation8] sm:$0x1]
          %v822 = vlaneseq
          %v823 = vshrl.u32 %v822, 7
          %v824 = vsub.s32 0, %v823
          %v825 = vrot.slane %v820, %v824
          %v827 = vmul.f32 %v788, %v825
          %v828 = vmul.f32 %v789, %v825
          %v829 = vmul.f32 %v790, %v825
          %v830 = vmul.f32 %v791, %v825
          %v831 = vmul.f32 %v792, %v825
          %v832 = vmul.f32 %v793, %v825
          %v833 = vmul.f32 %v794, %v825
          %v834 = vmul.f32 %v795, %v825
          %v835 = vmul.f32 %v796, %v825
          %v836 = vmul.f32 %v797, %v825
          %v837 = vmul.f32 %v798, %v825
          %v838 = vmul.f32 %v799, %v825
          %v839 = vmul.f32 %v800, %v825
          %v840 = vmul.f32 %v801, %v825
          %v841 = vmul.f32 %v802, %v825
          %v842 = vmul.f32 %v803, %v825
          %v843 = vmul.f32 %v804, %v825
          %v844 = vmul.f32 %v805, %v825
          %v845 = vmul.f32 %v806, %v825
          %v846 = vmul.f32 %v807, %v825
          %v847 = vmul.f32 %v808, %v825
          %v848 = vmul.f32 %v809, %v825
          %v849 = vmul.f32 %v810, %v825
          %v850 = vmul.f32 %v811, %v825
          %v851 = vmul.f32 %v812, %v825
          %v852 = vmul.f32 %v813, %v825
          %v853 = vmul.f32 %v814, %v825
          %v854 = vmul.f32 %v815, %v825
          %v855 = vmul.f32 %v816, %v825
          %v856 = vmul.f32 %v817, %v825
          %v857 = vmul.f32 %v818, %v825
          %v858 = vmul.f32 %v819, %v825
          %v859 = vld [vmem:[#allocation9] sm:$0x1]
          %v861 = vlaneseq
          %v862 = vshrl.u32 %v861, 7
          %v863 = vsub.s32 0, %v862
          %v864 = vrot.slane %v859, %v863
          %v866 = vadd.f32 %v827, %v864
          %v867 = vadd.f32 %v828, %v864
          %v868 = vadd.f32 %v829, %v864
          %v869 = vadd.f32 %v830, %v864
          %v870 = vadd.f32 %v831, %v864
          %v871 = vadd.f32 %v832, %v864
          %v872 = vadd.f32 %v833, %v864
          %v873 = vadd.f32 %v834, %v864
          %v874 = vadd.f32 %v835, %v864
          %v875 = vadd.f32 %v836, %v864
          %v876 = vadd.f32 %v837, %v864
          %v877 = vadd.f32 %v838, %v864
          %v878 = vadd.f32 %v839, %v864
          %v879 = vadd.f32 %v840, %v864
          %v880 = vadd.f32 %v841, %v864
          %v881 = vadd.f32 %v842, %v864
          %v882 = vadd.f32 %v843, %v864
          %v883 = vadd.f32 %v844, %v864
          %v884 = vadd.f32 %v845, %v864
          %v885 = vadd.f32 %v846, %v864
          %v886 = vadd.f32 %v847, %v864
          %v887 = vadd.f32 %v848, %v864
          %v888 = vadd.f32 %v849, %v864
          %v889 = vadd.f32 %v850, %v864
          %v890 = vadd.f32 %v851, %v864
          %v891 = vadd.f32 %v852, %v864
          %v892 = vadd.f32 %v853, %v864
          %v893 = vadd.f32 %v854, %v864
          %v894 = vadd.f32 %v855, %v864
          %v895 = vadd.f32 %v856, %v864
          %v896 = vadd.f32 %v857, %v864
          %v897 = vadd.f32 %v858, %v864
          %v898 = vxor.u32 %v866, 2147483648
          %v899 = vxor.u32 %v867, 2147483648
          %v900 = vxor.u32 %v868, 2147483648
          %v901 = vxor.u32 %v869, 2147483648
          %v902 = vxor.u32 %v870, 2147483648
          %v903 = vxor.u32 %v871, 2147483648
          %v904 = vxor.u32 %v872, 2147483648
          %v905 = vxor.u32 %v873, 2147483648
          %v906 = vxor.u32 %v874, 2147483648
          %v907 = vxor.u32 %v875, 2147483648
          %v908 = vxor.u32 %v876, 2147483648
          %v909 = vxor.u32 %v877, 2147483648
          %v910 = vxor.u32 %v878, 2147483648
          %v911 = vxor.u32 %v879, 2147483648
          %v912 = vxor.u32 %v880, 2147483648
          %v913 = vxor.u32 %v881, 2147483648
          %v914 = vxor.u32 %v882, 2147483648
          %v915 = vxor.u32 %v883, 2147483648
          %v916 = vxor.u32 %v884, 2147483648
          %v917 = vxor.u32 %v885, 2147483648
          %v918 = vxor.u32 %v886, 2147483648
          %v919 = vxor.u32 %v887, 2147483648
          %v920 = vxor.u32 %v888, 2147483648
          %v921 = vxor.u32 %v889, 2147483648
          %v922 = vxor.u32 %v890, 2147483648
          %v923 = vxor.u32 %v891, 2147483648
          %v924 = vxor.u32 %v892, 2147483648
          %v925 = vxor.u32 %v893, 2147483648
          %v926 = vxor.u32 %v894, 2147483648
          %v927 = vxor.u32 %v895, 2147483648
          %v928 = vxor.u32 %v896, 2147483648
          %v929 = vxor.u32 %v897, 2147483648
          %v930 = vmul.f32 %v898, 1.442695
          %v931 = vpow.pop %v930
          %v932 = vmul.f32 %v899, 1.442695
          %v933 = vpow.pop %v932
          %v934 = vmul.f32 %v900, 1.442695
          %v935 = vpow.pop %v934
          %v936 = vmul.f32 %v901, 1.442695
          %v937 = vpow.pop %v936
          %v938 = vmul.f32 %v902, 1.442695
          %v939 = vpow.pop %v938
          %v940 = vmul.f32 %v903, 1.442695
          %v941 = vpow.pop %v940
          %v942 = vmul.f32 %v904, 1.442695
          %v943 = vpow.pop %v942
          %v944 = vmul.f32 %v905, 1.442695
          %v945 = vpow.pop %v944
          %v946 = vmul.f32 %v906, 1.442695
          %v947 = vpow.pop %v946
          %v948 = vmul.f32 %v907, 1.442695
          %v949 = vpow.pop %v948
          %v950 = vmul.f32 %v908, 1.442695
          %v951 = vpow.pop %v950
          %v952 = vmul.f32 %v909, 1.442695
          %v953 = vpow.pop %v952
          %v954 = vmul.f32 %v910, 1.442695
          %v955 = vpow.pop %v954
          %v956 = vmul.f32 %v911, 1.442695
          %v957 = vpow.pop %v956
          %v958 = vmul.f32 %v912, 1.442695
          %v959 = vpow.pop %v958
          %v960 = vmul.f32 %v913, 1.442695
          %v961 = vpow.pop %v960
          %v962 = vmul.f32 %v914, 1.442695
          %v963 = vpow.pop %v962
          %v964 = vmul.f32 %v915, 1.442695
          %v965 = vpow.pop %v964
          %v966 = vmul.f32 %v916, 1.442695
          %v967 = vpow.pop %v966
          %v968 = vmul.f32 %v917, 1.442695
          %v969 = vpow.pop %v968
          %v970 = vmul.f32 %v918, 1.442695
          %v971 = vpow.pop %v970
          %v972 = vmul.f32 %v919, 1.442695
          %v973 = vpow.pop %v972
          %v974 = vmul.f32 %v920, 1.442695
          %v975 = vpow.pop %v974
          %v976 = vmul.f32 %v921, 1.442695
          %v977 = vpow.pop %v976
          %v978 = vmul.f32 %v922, 1.442695
          %v979 = vpow.pop %v978
          %v980 = vmul.f32 %v923, 1.442695
          %v981 = vpow.pop %v980
          %v982 = vmul.f32 %v924, 1.442695
          %v983 = vpow.pop %v982
          %v984 = vmul.f32 %v925, 1.442695
          %v985 = vpow.pop %v984
          %v986 = vmul.f32 %v926, 1.442695
          %v987 = vpow.pop %v986
          %v988 = vmul.f32 %v927, 1.442695
          %v989 = vpow.pop %v988
          %v990 = vmul.f32 %v928, 1.442695
          %v991 = vpow.pop %v990
          %v992 = vmul.f32 %v929, 1.442695
          %v993 = vpow.pop %v992
          %v994 = vadd.f32 %v931, 1.0
          %v995 = vadd.f32 %v933, 1.0
          %v996 = vadd.f32 %v935, 1.0
          %v997 = vadd.f32 %v937, 1.0
          %v998 = vadd.f32 %v939, 1.0
          %v999 = vadd.f32 %v941, 1.0
          %v1000 = vadd.f32 %v943, 1.0
          %v1001 = vadd.f32 %v945, 1.0
          %v1002 = vadd.f32 %v947, 1.0
          %v1003 = vadd.f32 %v949, 1.0
          %v1004 = vadd.f32 %v951, 1.0
          %v1005 = vadd.f32 %v953, 1.0
          %v1006 = vadd.f32 %v955, 1.0
          %v1007 = vadd.f32 %v957, 1.0
          %v1008 = vadd.f32 %v959, 1.0
          %v1009 = vadd.f32 %v961, 1.0
          %v1010 = vadd.f32 %v963, 1.0
          %v1011 = vadd.f32 %v965, 1.0
          %v1012 = vadd.f32 %v967, 1.0
          %v1013 = vadd.f32 %v969, 1.0
          %v1014 = vadd.f32 %v971, 1.0
          %v1015 = vadd.f32 %v973, 1.0
          %v1016 = vadd.f32 %v975, 1.0
          %v1017 = vadd.f32 %v977, 1.0
          %v1018 = vadd.f32 %v979, 1.0
          %v1019 = vadd.f32 %v981, 1.0
          %v1020 = vadd.f32 %v983, 1.0
          %v1021 = vadd.f32 %v985, 1.0
          %v1022 = vadd.f32 %v987, 1.0
          %v1023 = vadd.f32 %v989, 1.0
          %v1024 = vadd.f32 %v991, 1.0
          %v1025 = vadd.f32 %v993, 1.0
          %v1026 = vrcp.pop %v994
          %v1027 = vmul.f32 1.0, %v1026
          %v1028 = vrcp.pop %v995
          %v1029 = vmul.f32 1.0, %v1028
          %v1030 = vrcp.pop %v996
          %v1031 = vmul.f32 1.0, %v1030
          %v1032 = vrcp.pop %v997
          %v1033 = vmul.f32 1.0, %v1032
          %v1034 = vrcp.pop %v998
          %v1035 = vmul.f32 1.0, %v1034
          %v1036 = vrcp.pop %v999
          %v1037 = vmul.f32 1.0, %v1036
          %v1038 = vrcp.pop %v1000
          %v1039 = vmul.f32 1.0, %v1038
          %v1040 = vrcp.pop %v1001
          %v1041 = vmul.f32 1.0, %v1040
          %v1042 = vrcp.pop %v1002
          %v1043 = vmul.f32 1.0, %v1042
          %v1044 = vrcp.pop %v1003
          %v1045 = vmul.f32 1.0, %v1044
          %v1046 = vrcp.pop %v1004
          %v1047 = vmul.f32 1.0, %v1046
          %v1048 = vrcp.pop %v1005
          %v1049 = vmul.f32 1.0, %v1048
          %v1050 = vrcp.pop %v1006
          %v1051 = vmul.f32 1.0, %v1050
          %v1052 = vrcp.pop %v1007
          %v1053 = vmul.f32 1.0, %v1052
          %v1054 = vrcp.pop %v1008
          %v1055 = vmul.f32 1.0, %v1054
          %v1056 = vrcp.pop %v1009
          %v1057 = vmul.f32 1.0, %v1056
          %v1058 = vrcp.pop %v1010
          %v1059 = vmul.f32 1.0, %v1058
          %v1060 = vrcp.pop %v1011
          %v1061 = vmul.f32 1.0, %v1060
          %v1062 = vrcp.pop %v1012
          %v1063 = vmul.f32 1.0, %v1062
          %v1064 = vrcp.pop %v1013
          %v1065 = vmul.f32 1.0, %v1064
          %v1066 = vrcp.pop %v1014
          %v1067 = vmul.f32 1.0, %v1066
          %v1068 = vrcp.pop %v1015
          %v1069 = vmul.f32 1.0, %v1068
          %v1070 = vrcp.pop %v1016
          %v1071 = vmul.f32 1.0, %v1070
          %v1072 = vrcp.pop %v1017
          %v1073 = vmul.f32 1.0, %v1072
          %v1074 = vrcp.pop %v1018
          %v1075 = vmul.f32 1.0, %v1074
          %v1076 = vrcp.pop %v1019
          %v1077 = vmul.f32 1.0, %v1076
          %v1078 = vrcp.pop %v1020
          %v1079 = vmul.f32 1.0, %v1078
          %v1080 = vrcp.pop %v1021
          %v1081 = vmul.f32 1.0, %v1080
          %v1082 = vrcp.pop %v1022
          %v1083 = vmul.f32 1.0, %v1082
          %v1084 = vrcp.pop %v1023
          %v1085 = vmul.f32 1.0, %v1084
          %v1086 = vrcp.pop %v1024
          %v1087 = vmul.f32 1.0, %v1086
          %v1088 = vrcp.pop %v1025
          %v1089 = vmul.f32 1.0, %v1088
          %v1090 = vmul.f32 %v866, %v1027
          %v1091 = vmul.f32 %v867, %v1029
          %v1092 = vmul.f32 %v868, %v1031
          %v1093 = vmul.f32 %v869, %v1033
          %v1094 = vmul.f32 %v870, %v1035
          %v1095 = vmul.f32 %v871, %v1037
          %v1096 = vmul.f32 %v872, %v1039
          %v1097 = vmul.f32 %v873, %v1041
          %v1098 = vmul.f32 %v874, %v1043
          %v1099 = vmul.f32 %v875, %v1045
          %v1100 = vmul.f32 %v876, %v1047
          %v1101 = vmul.f32 %v877, %v1049
          %v1102 = vmul.f32 %v878, %v1051
          %v1103 = vmul.f32 %v879, %v1053
          %v1104 = vmul.f32 %v880, %v1055
          %v1105 = vmul.f32 %v881, %v1057
          %v1106 = vmul.f32 %v882, %v1059
          %v1107 = vmul.f32 %v883, %v1061
          %v1108 = vmul.f32 %v884, %v1063
          %v1109 = vmul.f32 %v885, %v1065
          %v1110 = vmul.f32 %v886, %v1067
          %v1111 = vmul.f32 %v887, %v1069
          %v1112 = vmul.f32 %v888, %v1071
          %v1113 = vmul.f32 %v889, %v1073
          %v1114 = vmul.f32 %v890, %v1075
          %v1115 = vmul.f32 %v891, %v1077
          %v1116 = vmul.f32 %v892, %v1079
          %v1117 = vmul.f32 %v893, %v1081
          %v1118 = vmul.f32 %v894, %v1083
          %v1119 = vmul.f32 %v895, %v1085
          %v1120 = vmul.f32 %v896, %v1087
          %v1121 = vmul.f32 %v897, %v1089
          %v1122 = vpack.c.bf16 %v1091, %v1090
          %v1123 = vpack.c.bf16 %v1093, %v1092
          %v1124 = vpack.c.bf16 %v1095, %v1094
          %v1125 = vpack.c.bf16 %v1097, %v1096
          %v1126 = vpack.c.bf16 %v1099, %v1098
          %v1127 = vpack.c.bf16 %v1101, %v1100
          %v1128 = vpack.c.bf16 %v1103, %v1102
          %v1129 = vpack.c.bf16 %v1105, %v1104
          %v1130 = vpack.c.bf16 %v1107, %v1106
          %v1131 = vpack.c.bf16 %v1109, %v1108
          %v1132 = vpack.c.bf16 %v1111, %v1110
          %v1133 = vpack.c.bf16 %v1113, %v1112
          %v1134 = vpack.c.bf16 %v1115, %v1114
          %v1135 = vpack.c.bf16 %v1117, %v1116
          %v1136 = vpack.c.bf16 %v1119, %v1118
          %v1137 = vpack.c.bf16 %v1121, %v1120
          %v1154 = vunpack.c.l.b16 %v1122
          %v1155 = vunpack.c.h.b16 %v1122
          %v1156 = vunpack.c.l.b16 %v1123
          %v1157 = vunpack.c.h.b16 %v1123
          %v1158 = vunpack.c.l.b16 %v1124
          %v1159 = vunpack.c.h.b16 %v1124
          %v1160 = vunpack.c.l.b16 %v1125
          %v1161 = vunpack.c.h.b16 %v1125
          %v1162 = vunpack.c.l.b16 %v1126
          %v1163 = vunpack.c.h.b16 %v1126
          %v1164 = vunpack.c.l.b16 %v1127
          %v1165 = vunpack.c.h.b16 %v1127
          %v1166 = vunpack.c.l.b16 %v1128
          %v1167 = vunpack.c.h.b16 %v1128
          %v1168 = vunpack.c.l.b16 %v1129
          %v1169 = vunpack.c.h.b16 %v1129
          %v1170 = vunpack.c.l.b16 %v1130
          %v1171 = vunpack.c.h.b16 %v1130
          %v1172 = vunpack.c.l.b16 %v1131
          %v1173 = vunpack.c.h.b16 %v1131
          %v1174 = vunpack.c.l.b16 %v1132
          %v1175 = vunpack.c.h.b16 %v1132
          %v1176 = vunpack.c.l.b16 %v1133
          %v1177 = vunpack.c.h.b16 %v1133
          %v1178 = vunpack.c.l.b16 %v1134
          %v1179 = vunpack.c.h.b16 %v1134
          %v1180 = vunpack.c.l.b16 %v1135
          %v1181 = vunpack.c.h.b16 %v1135
          %v1182 = vunpack.c.l.b16 %v1136
          %v1183 = vunpack.c.h.b16 %v1136
          %v1184 = vunpack.c.l.b16 %v1137
          %v1185 = vunpack.c.h.b16 %v1137
          %v1186 = vpack.c.b16 %v1154, %v1154
          %v1187 = vpack.c.b16 %v1155, %v1155
          %v1188 = vpack.c.b16 %v1156, %v1156
          %v1189 = vpack.c.b16 %v1157, %v1157
          %v1190 = vpack.c.b16 %v1158, %v1158
          %v1191 = vpack.c.b16 %v1159, %v1159
          %v1192 = vpack.c.b16 %v1160, %v1160
          %v1193 = vpack.c.b16 %v1161, %v1161
          %v1194 = vpack.c.b16 %v1162, %v1162
          %v1195 = vpack.c.b16 %v1163, %v1163
          %v1196 = vpack.c.b16 %v1164, %v1164
          %v1197 = vpack.c.b16 %v1165, %v1165
          %v1198 = vpack.c.b16 %v1166, %v1166
          %v1199 = vpack.c.b16 %v1167, %v1167
          %v1200 = vpack.c.b16 %v1168, %v1168
          %v1201 = vpack.c.b16 %v1169, %v1169
          %v1202 = vpack.c.b16 %v1170, %v1170
          %v1203 = vpack.c.b16 %v1171, %v1171
          %v1204 = vpack.c.b16 %v1172, %v1172
          %v1205 = vpack.c.b16 %v1173, %v1173
          %v1206 = vpack.c.b16 %v1174, %v1174
          %v1207 = vpack.c.b16 %v1175, %v1175
          %v1208 = vpack.c.b16 %v1176, %v1176
          %v1209 = vpack.c.b16 %v1177, %v1177
          %v1210 = vpack.c.b16 %v1178, %v1178
          %v1211 = vpack.c.b16 %v1179, %v1179
          %v1212 = vpack.c.b16 %v1180, %v1180
          %v1213 = vpack.c.b16 %v1181, %v1181
          %v1214 = vpack.c.b16 %v1182, %v1182
          %v1215 = vpack.c.b16 %v1183, %v1183
          %v1216 = vpack.c.b16 %v1184, %v1184
          %v1217 = vpack.c.b16 %v1185, %v1185
          %1250 = vst [vmem:[%s304] sm:$0xf] %v1186
          %1251 = vst [vmem:[%s304 + $0x4] sm:$0xf] %v1187
          %1252 = vst [vmem:[%s304 + $0x8] sm:$0xf] %v1188
          %1253 = vst [vmem:[%s304 + $0xc] sm:$0xf] %v1189
          %1254 = vst [vmem:[%s304 + $0x10] sm:$0xf] %v1190
          %1255 = vst [vmem:[%s304 + $0x14] sm:$0xf] %v1191
          %1256 = vst [vmem:[%s304 + $0x18] sm:$0xf] %v1192
          %1257 = vst [vmem:[%s304 + $0x1c] sm:$0xf] %v1193
          %1258 = vst [vmem:[%s304 + $0x20] sm:$0xf] %v1194
          %1259 = vst [vmem:[%s304 + $0x24] sm:$0xf] %v1195
          %1260 = vst [vmem:[%s304 + $0x28] sm:$0xf] %v1196
          %1261 = vst [vmem:[%s304 + $0x2c] sm:$0xf] %v1197
          %1262 = vst [vmem:[%s304 + $0x30] sm:$0xf] %v1198
          %1263 = vst [vmem:[%s304 + $0x34] sm:$0xf] %v1199
          %1264 = vst [vmem:[%s304 + $0x38] sm:$0xf] %v1200
          %1265 = vst [vmem:[%s304 + $0x3c] sm:$0xf] %v1201
          %1266 = vst [vmem:[%s304 + $0x40] sm:$0xf] %v1202
          %1267 = vst [vmem:[%s304 + $0x44] sm:$0xf] %v1203
          %1268 = vst [vmem:[%s304 + $0x48] sm:$0xf] %v1204
          %1269 = vst [vmem:[%s304 + $0x4c] sm:$0xf] %v1205
          %1270 = vst [vmem:[%s304 + $0x50] sm:$0xf] %v1206
          %1271 = vst [vmem:[%s304 + $0x54] sm:$0xf] %v1207
          %1272 = vst [vmem:[%s304 + $0x58] sm:$0xf] %v1208
          %1273 = vst [vmem:[%s304 + $0x5c] sm:$0xf] %v1209
          %1274 = vst [vmem:[%s304 + $0x60] sm:$0xf] %v1210
          %1275 = vst [vmem:[%s304 + $0x64] sm:$0xf] %v1211
          %1276 = vst [vmem:[%s304 + $0x68] sm:$0xf] %v1212
          %1277 = vst [vmem:[%s304 + $0x6c] sm:$0xf] %v1213
          %1278 = vst [vmem:[%s304 + $0x70] sm:$0xf] %v1214
          %1279 = vst [vmem:[%s304 + $0x74] sm:$0xf] %v1215
          %1280 = vst [vmem:[%s304 + $0x78] sm:$0xf] %v1216
          %1281 = vst [vmem:[%s304 + $0x7c] sm:$0xf] %v1217
        $region60: #{tpu_custom_call.1} parent=35 // pred_fallthru
          _
        %s1282 = sand.u32 %s160, 1
        %s1283 = scalar_lea.sflag [#allocation5], %s1282
        %s1284 = sand.u32 %s160, 1
        %s1285 = smul.addr %s1284, 128
        %s1286 = scalar_lea.vmem [#allocation11], %s1285
        // Predicated region
        $region61: #{tpu_custom_call.1} parent=35 // pred_check
          %p1287 = pneg %p170
        $region62: #{tpu_custom_call.1} parent=35 // pred_check_branch
          %1289 = sbr.rel (%p1287) target = $region64
        $region63: #{tpu_custom_call.1} parent=35 // pred_region
          %s1290 = smul.u32 32, %s28
          %s1292 = ssub.s32 2048, 2048
          %1293 = vsyncadd %s1283, %s1292
          %s1294 = sadd.s32 %s29, %s1290
          %s1295 = smul.addr %s1294, 64
          %s1296 = scalar_lea.hbm %s4, %s1295
          %s1297 = sshll.u32 %s1286, 4
          %s1298 = int_to_ptr.vmem [resolvable:$true] %s1297
          %1303 = dma.vmem_to_hbm [thread:$0]  %s1298, 2048, %s1296, %s1283, 64, 64, 4
        $region64: #{tpu_custom_call.1} parent=35 // pred_fallthru
          _
      $region36: #{tpu_custom_call.1} parent=5 // pred_fallthru
        _
      %p1304 = scmp.le.s32.totalorder 2, %s18
      // Predicated region
      $region65: #{tpu_custom_call.1} parent=5 // pred_check
        %p1305 = pneg %p1304
      $region66: #{tpu_custom_call.1} parent=5 // pred_check_branch
        %1307 = sbr.rel (%p1305) target = $region68
      $region67: #{tpu_custom_call.1} parent=5 // pred_region
        %s1308 = ssub.s32 %s18, 2
        // Predicated region
        $region69: #{tpu_custom_call.1} parent=67 // pred_check
          %p1309 = pneg %p176
        $region70: #{tpu_custom_call.1} parent=67 // pred_check_branch
          %1311 = sbr.rel (%p1309) target = $region72
        $region71: #{tpu_custom_call.1} parent=67 // pred_region
          %s1312 = sand.u32 %s161, 1
          %s1313 = scalar_lea.sflag [#allocation5], %s1312
          %s1314 = sand.u32 %s161, 1
          %s1315 = smul.addr %s1314, 128
          %s1316 = scalar_lea.vmem [#allocation11], %s1315
          %1317 = dma.done %s1313, 2048
        $region72: #{tpu_custom_call.1} parent=67 // pred_fallthru
          _
      $region68: #{tpu_custom_call.1} parent=5 // pred_fallthru
        _
    $region6: #{tpu_custom_call.1} parent=1 // loop_footer
      %s22 = sadd.s32 1, %s18
    $region7: #{tpu_custom_call.1} parent=1 // loop_footer_branch
      %17 = sbr.rel target = $region3
    $region8: #{tpu_custom_call.1} parent=1 // loop_exit
      _
    %1318 = vsyncpa [#allocation4], 1
    %s1319 = scalar_lea.sflag [#allocation4], 1
    %1320 = vsyncpa %s1319, 1
    %1321 = vsyncpa [#allocation7], 1
    %1322 = vsyncpa [#allocation10], 1
    %1323 = vsyncpa [#allocation5], 1
    %s1324 = scalar_lea.sflag [#allocation5], 1
    %1325 = vsyncpa %s1324, 1

</llo_original>
